<compile_context>
chip_gen: v7x
topology: tpu7x:2x2x1
jax: 0.10.0
libtpu: 0.0.40
codegen_flags: <defaults>
</compile_context>

<pallas_src>
import math
import numpy as np
import jax
import jax.numpy as jnp
from jax.experimental import pallas as pl
from jax.experimental.pallas import tpu as pltpu


def _round_up(v, m):
    return (v + m - 1) // m * m


def upsample_conv(x, w, b):
    """x: (N, C, H, W) f32; w: (Cout, Cin, 3, 3); b: (Cout,).  Returns (N, Cout, 2H, 2W)."""
    N, C, H, W = x.shape
    Cout = w.shape[0]
    Hp, Wp = H + 2, W + 2                  # zero-padded ORIGINAL resolution
    S = _round_up(Wp, 128)                 # lane-aligned flat row stride
    Cpad = _round_up(C, 8)                 # sublane-aligned channel block per tap
    K = H * S                              # flat per-phase output length (mult of 128)
    Lp = (Hp + 1) * S                      # flat padded-input length (+1 zero row keeps
                                           # every shifted slice in bounds)
    Lm = Hp * S                            # length of each column-shifted view

    # ---- wrapper glue (zero-FLOP data movement, original resolution only) -------------
    xp = jnp.pad(x, ((0, 0), (0, Cpad - C), (1, 1), (1, 1)))        # (N, Cpad, Hp, Wp)
    xf = jnp.pad(xp, ((0, 0), (0, 0), (0, 1), (0, S - Wp)))         # (N, Cpad, Hp+1, S)
    xf = xf.reshape(N, Cpad, Lp)

    # ---- phase-combined weights --------------------------------------------------------
    # M[parity, abs_offset_into_x_pad, original_tap]  (one-hot over abs offset):
    #   parity 0: offset0 <- tap0, offset1 <- tap1+tap2
    #   parity 1: offset1 <- tap0+tap1, offset2 <- tap2
    M = jnp.array([[[1, 0, 0], [0, 1, 1], [0, 0, 0]],
                   [[0, 0, 0], [1, 1, 0], [0, 0, 1]]], dtype=w.dtype)
    wabs = jnp.einsum('iad,jbe,ocde->ijoabc', M, M, w,
                      precision=jax.lax.Precision.HIGHEST)           # (2,2,Cout,3,3,C)
    wk = wabs.reshape(4 * Cout, 3, 3, C)
    wk = jnp.pad(wk, ((0, 0), (0, 0), (0, 0), (0, Cpad - C)))
    wk = wk.reshape(4 * Cout, 9 * Cpad)                              # (4*Cout, 9*Cpad)
    b2 = jnp.tile(b, 4).reshape(4 * Cout, 1)                         # bias per (phase,o) row

    def kernel(x_ref, w_ref, b_ref, o_ref, stack_ref):
        # x_ref: (1, Cpad, Lp)   w_ref: (4*Cout, 9*Cpad)   b_ref: (4*Cout, 1)
        # o_ref: (1, 4*Cout, K)  stack_ref: VMEM (9*Cpad, K) im2col scratch
        xflat = x_ref[0]                                             # (Cpad, Lp)
        # Three column-shifted views: only shifts 1 and 2 cost a one-time lane relayout.
        xs = [xflat[:, bcol:bcol + Lm] for bcol in range(3)]
        for a in range(3):                 # row offset a*S is a multiple of 128 -> aligned
            for bcol in range(3):
                t = 3 * a + bcol
                stack_ref[pl.ds(t * Cpad, Cpad), :] = xs[bcol][:, a * S:a * S + K]
        # Single fused MXU matmul: all 4 phases and all 3x3 taps in one contraction.
        acc = jnp.dot(w_ref[...], stack_ref[...], preferred_element_type=jnp.float32)
        o_ref[0] = (acc + b_ref[...]).astype(o_ref.dtype)

    out_flat = pl.pallas_call(
        kernel,
        out_shape=jax.ShapeDtypeStruct((N, 4 * Cout, K), x.dtype),
        grid_spec=pltpu.PrefetchScalarGridSpec(
            num_scalar_prefetch=0,
            grid=(N,),
            in_specs=[
                pl.BlockSpec((1, Cpad, Lp), lambda n: (n, 0, 0)),
                pl.BlockSpec((4 * Cout, 9 * Cpad), lambda n: (0, 0)),
                pl.BlockSpec((4 * Cout, 1), lambda n: (0, 0)),
            ],
            out_specs=pl.BlockSpec((1, 4 * Cout, K), lambda n: (n, 0, 0)),
            scratch_shapes=[pltpu.VMEM((9 * Cpad, K), x.dtype)],
        ),
        compiler_params=pltpu.CompilerParams(
            dimension_semantics=("parallel",)),
    )(xf, wk, b2)

    # ---- un-flatten: drop junk lanes and pixel-shuffle the 4 phases back to (2H, 2W) ---
    y = out_flat.reshape(N, 2, 2, Cout, H, S)[:, :, :, :, :, :W]     # (N, pi, pj, Cout, H, W)
    y = jnp.transpose(y, (0, 3, 4, 1, 5, 2))                          # (N, Cout, H, pi, W, pj)
    return y.reshape(N, Cout, 2 * H, 2 * W)


def ref_forward(x, w, b):
    """Pure-JAX reference: nn.Upsample(scale=2, nearest) -> Conv2d(dim, dim, 3, padding=1)."""
    up = jnp.repeat(jnp.repeat(x, 2, axis=2), 2, axis=3)
    y = jax.lax.conv_general_dilated(
        up, w, window_strides=(1, 1), padding=((1, 1), (1, 1)),
        dimension_numbers=("NCHW", "OIHW", "NCHW"))
    return y + b.reshape(1, -1, 1, 1)


if __name__ == "__main__":
    key = jax.random.PRNGKey(0)
    kx, kw, kb = jax.random.split(key, 3)

    N, C, H, W = 2, 4, 16, 16            # dim = 4
    x = jax.random.normal(kx, (N, C, H, W), jnp.float32)

    # Deterministic Conv2d(dim, dim, 3) parameter init (kaiming-uniform-style bounds).
    fan_in = C * 3 * 3
    bound = 1.0 / math.sqrt(fan_in)
    w = jax.random.uniform(kw, (C, C, 3, 3), jnp.float32, minval=-bound, maxval=bound)
    b = jax.random.uniform(kb, (C,), jnp.float32, minval=-bound, maxval=bound)

    y = upsample_conv(x, w, b)
    jax.block_until_ready(y)

    y_ref = ref_forward(x, w, b)
    assert y.shape == (N, C, 2 * H, 2 * W)
    np.testing.assert_allclose(np.asarray(y), np.asarray(y_ref), atol=5e-5, rtol=5e-5)
    print("KERNEL_OK")
</pallas_src>

<mosaic_0001>
module attributes {stable_mosaic.version = 11 : i64} {
  func.func @kernel(%arg0: i32, %arg1: memref<1x8x2432xf32, #tpu.memory_space<vmem>>, %arg2: memref<16x72xf32, #tpu.memory_space<vmem>>, %arg3: memref<16x1xf32, #tpu.memory_space<vmem>>, %arg4: memref<1x16x2048xf32, #tpu.memory_space<vmem>>, %arg5: memref<72x2048xf32, #tpu.memory_space<vmem>>) attributes {dimension_semantics = [#tpu.dimension_semantics<parallel>], iteration_bounds = array<i64: 2>, scalar_prefetch = 0 : i64, scratch_operands = 1 : i64, tpu.core_type = #tpu.core_type<tc>, window_params = [{transform_indices = @transform_0, window_bounds = array<i64: 1, 8, 2432>}, {pipeline_mode = #tpu.pipeline_mode<synchronous>, transform_indices = @transform_1, window_bounds = array<i64: 16, 72>}, {pipeline_mode = #tpu.pipeline_mode<synchronous>, transform_indices = @transform_2, window_bounds = array<i64: 16, 1>}, {transform_indices = @transform_3, window_bounds = array<i64: 1, 16, 2048>}]} {
    %c0 = arith.constant 0 : index
    %c0_0 = arith.constant 0 : index
    %c0_1 = arith.constant 0 : index
    %0 = vector.load %arg1[%c0, %c0_0, %c0_1] : memref<1x8x2432xf32, #tpu.memory_space<vmem>>, vector<1x8x2432xf32>
    %1 = vector.shape_cast %0 : vector<1x8x2432xf32> to vector<8x2432xf32>
    %2 = vector.extract_strided_slice %1 {offsets = [0, 0], sizes = [8, 2304], strides = [1, 1]} : vector<8x2432xf32> to vector<8x2304xf32>
    %3 = vector.extract_strided_slice %1 {offsets = [0, 1], sizes = [8, 2304], strides = [1, 1]} : vector<8x2432xf32> to vector<8x2304xf32>
    %4 = vector.extract_strided_slice %1 {offsets = [0, 2], sizes = [8, 2304], strides = [1, 1]} : vector<8x2432xf32> to vector<8x2304xf32>
    %5 = vector.extract_strided_slice %2 {offsets = [0, 0], sizes = [8, 2048], strides = [1, 1]} : vector<8x2304xf32> to vector<8x2048xf32>
    %c0_2 = arith.constant 0 : index
    %c0_3 = arith.constant 0 : index
    %6 = vector.load %arg5[%c0_2, %c0_3] : memref<72x2048xf32, #tpu.memory_space<vmem>>, vector<8x2048xf32>
    tpu.vector_store %arg5[%c0_2, %c0_3], %5 {strides = array<i32>} : memref<72x2048xf32, #tpu.memory_space<vmem>>, vector<8x2048xf32>,
    %7 = vector.extract_strided_slice %3 {offsets = [0, 0], sizes = [8, 2048], strides = [1, 1]} : vector<8x2304xf32> to vector<8x2048xf32>
    %c8 = arith.constant 8 : index
    %c0_4 = arith.constant 0 : index
    %8 = vector.load %arg5[%c8, %c0_4] : memref<72x2048xf32, #tpu.memory_space<vmem>>, vector<8x2048xf32>
    tpu.vector_store %arg5[%c8, %c0_4], %7 {strides = array<i32>} : memref<72x2048xf32, #tpu.memory_space<vmem>>, vector<8x2048xf32>,
    %9 = vector.extract_strided_slice %4 {offsets = [0, 0], sizes = [8, 2048], strides = [1, 1]} : vector<8x2304xf32> to vector<8x2048xf32>
    %c16 = arith.constant 16 : index
    %c0_5 = arith.constant 0 : index
    %10 = vector.load %arg5[%c16, %c0_5] : memref<72x2048xf32, #tpu.memory_space<vmem>>, vector<8x2048xf32>
    tpu.vector_store %arg5[%c16, %c0_5], %9 {strides = array<i32>} : memref<72x2048xf32, #tpu.memory_space<vmem>>, vector<8x2048xf32>,
    %11 = vector.extract_strided_slice %2 {offsets = [0, 128], sizes = [8, 2048], strides = [1, 1]} : vector<8x2304xf32> to vector<8x2048xf32>
    %c24 = arith.constant 24 : index
    %c0_6 = arith.constant 0 : index
    %12 = vector.load %arg5[%c24, %c0_6] : memref<72x2048xf32, #tpu.memory_space<vmem>>, vector<8x2048xf32>
    tpu.vector_store %arg5[%c24, %c0_6], %11 {strides = array<i32>} : memref<72x2048xf32, #tpu.memory_space<vmem>>, vector<8x2048xf32>,
    %13 = vector.extract_strided_slice %3 {offsets = [0, 128], sizes = [8, 2048], strides = [1, 1]} : vector<8x2304xf32> to vector<8x2048xf32>
    %c32 = arith.constant 32 : index
    %c0_7 = arith.constant 0 : index
    %14 = vector.load %arg5[%c32, %c0_7] : memref<72x2048xf32, #tpu.memory_space<vmem>>, vector<8x2048xf32>
    tpu.vector_store %arg5[%c32, %c0_7], %13 {strides = array<i32>} : memref<72x2048xf32, #tpu.memory_space<vmem>>, vector<8x2048xf32>,
    %15 = vector.extract_strided_slice %4 {offsets = [0, 128], sizes = [8, 2048], strides = [1, 1]} : vector<8x2304xf32> to vector<8x2048xf32>
    %c40 = arith.constant 40 : index
    %c0_8 = arith.constant 0 : index
    %16 = vector.load %arg5[%c40, %c0_8] : memref<72x2048xf32, #tpu.memory_space<vmem>>, vector<8x2048xf32>
    tpu.vector_store %arg5[%c40, %c0_8], %15 {strides = array<i32>} : memref<72x2048xf32, #tpu.memory_space<vmem>>, vector<8x2048xf32>,
    %17 = vector.extract_strided_slice %2 {offsets = [0, 256], sizes = [8, 2048], strides = [1, 1]} : vector<8x2304xf32> to vector<8x2048xf32>
    %c48 = arith.constant 48 : index
    %c0_9 = arith.constant 0 : index
    %18 = vector.load %arg5[%c48, %c0_9] : memref<72x2048xf32, #tpu.memory_space<vmem>>, vector<8x2048xf32>
    tpu.vector_store %arg5[%c48, %c0_9], %17 {strides = array<i32>} : memref<72x2048xf32, #tpu.memory_space<vmem>>, vector<8x2048xf32>,
    %19 = vector.extract_strided_slice %3 {offsets = [0, 256], sizes = [8, 2048], strides = [1, 1]} : vector<8x2304xf32> to vector<8x2048xf32>
    %c56 = arith.constant 56 : index
    %c0_10 = arith.constant 0 : index
    %20 = vector.load %arg5[%c56, %c0_10] : memref<72x2048xf32, #tpu.memory_space<vmem>>, vector<8x2048xf32>
    tpu.vector_store %arg5[%c56, %c0_10], %19 {strides = array<i32>} : memref<72x2048xf32, #tpu.memory_space<vmem>>, vector<8x2048xf32>,
    %21 = vector.extract_strided_slice %4 {offsets = [0, 256], sizes = [8, 2048], strides = [1, 1]} : vector<8x2304xf32> to vector<8x2048xf32>
    %c64 = arith.constant 64 : index
    %c0_11 = arith.constant 0 : index
    %22 = vector.load %arg5[%c64, %c0_11] : memref<72x2048xf32, #tpu.memory_space<vmem>>, vector<8x2048xf32>
    tpu.vector_store %arg5[%c64, %c0_11], %21 {strides = array<i32>} : memref<72x2048xf32, #tpu.memory_space<vmem>>, vector<8x2048xf32>,
    %c0_12 = arith.constant 0 : index
    %c0_13 = arith.constant 0 : index
    %23 = vector.load %arg2[%c0_12, %c0_13] : memref<16x72xf32, #tpu.memory_space<vmem>>, vector<16x72xf32>
    %c0_14 = arith.constant 0 : index
    %c0_15 = arith.constant 0 : index
    %24 = vector.load %arg5[%c0_14, %c0_15] : memref<72x2048xf32, #tpu.memory_space<vmem>>, vector<72x2048xf32>
    %cst = arith.constant dense<0.000000e+00> : vector<16x2048xf32>
    %25 = tpu.matmul %23, %24, %cst {dimension_numbers = #tpu.dot_dimension_numbers<[1], [0], [0], [1], [0, 0, 1, 1], [], []>} : vector<16x72xf32>, vector<72x2048xf32>, vector<16x2048xf32> -> vector<16x2048xf32>
    %c0_16 = arith.constant 0 : index
    %c0_17 = arith.constant 0 : index
    %26 = vector.load %arg3[%c0_16, %c0_17] : memref<16x1xf32, #tpu.memory_space<vmem>>, vector<16x1xf32>
    %27 = vector.broadcast %26 : vector<16x1xf32> to vector<16x2048xf32>
    %28 = arith.addf %25, %27 : vector<16x2048xf32>
    %c0_18 = arith.constant 0 : index
    %c0_19 = arith.constant 0 : index
    %c0_20 = arith.constant 0 : index
    %29 = vector.load %arg4[%c0_18, %c0_19, %c0_20] : memref<1x16x2048xf32, #tpu.memory_space<vmem>>, vector<1x16x2048xf32>
    %30 = vector.shape_cast %29 : vector<1x16x2048xf32> to vector<16x2048xf32>
    %31 = vector.shape_cast %28 : vector<16x2048xf32> to vector<1x16x2048xf32>
    tpu.vector_store %arg4[%c0_18, %c0_19, %c0_20], %31 {strides = array<i32>} : memref<1x16x2048xf32, #tpu.memory_space<vmem>>, vector<1x16x2048xf32>,
    return
  }
  func.func @transform_0(%arg0: i32) -> (i32, i32, i32) {
    %c0_i32 = arith.constant 0 : i32
    %c0_i32_0 = arith.constant 0 : i32
    %c0_i32_1 = arith.constant 0 : i32
    return %arg0, %c0_i32, %c0_i32_0 : i32, i32, i32
  }
  func.func @transform_1(%arg0: i32) -> (i32, i32) {
    %c0_i32 = arith.constant 0 : i32
    %c0_i32_0 = arith.constant 0 : i32
    %c0_i32_1 = arith.constant 0 : i32
    return %c0_i32, %c0_i32_0 : i32, i32
  }
  func.func @transform_2(%arg0: i32) -> (i32, i32) {
    %c0_i32 = arith.constant 0 : i32
    %c0_i32_0 = arith.constant 0 : i32
    %c0_i32_1 = arith.constant 0 : i32
    return %c0_i32, %c0_i32_0 : i32, i32
  }
  func.func @transform_3(%arg0: i32) -> (i32, i32, i32) {
    %c0_i32 = arith.constant 0 : i32
    %c0_i32_0 = arith.constant 0 : i32
    %c0_i32_1 = arith.constant 0 : i32
    return %arg0, %c0_i32, %c0_i32_0 : i32, i32, i32
  }
}

</mosaic_0001>

<llo_original>
// kernel: tpu_custom_call.1
$region0: #{tpu_custom_call.1}
  #allocation0 [shape = 'u32[]', space=smem, size = 0x4, offset = 0x4, fixed_abs, tag = 'smem constant byte address 0x4 - core index']
  #allocation1 [shape = 'u32[144,128]{1,0:T(1,128)}', space=vmem, size = 0x12000, scoped, tag = 'internal scratch']
  #allocation2 [shape = 'f32[72,2048]{1,0:T(8,128)}', space=vmem, size = 0x90000, scoped, tag = 'scratch operand']
  %s0 = inlined_call_operand.hbm [shape: f32[2,8,2432], index: 0, kind: input, shape index: {}]
  %s1 = inlined_call_operand.vmem [shape: f32[16,72], index: 1, kind: input, shape index: {}]
  %s2 = inlined_call_operand.vmem [shape: f32[16,1], index: 2, kind: input, shape index: {}]
  %s3 = inlined_call_operand.hbm [shape: f32[2,16,2048], index: 3, kind: output, shape index: {}]
  %s4 = sld [smem:[#allocation0]]
  $region49: #{tpu_custom_call.1} parent=0
    _
  %s6 = ssub.s32 1, %s4
  %s7 = scalar_select 0, %s6, %s4
  $region1: #{tpu_custom_call.1} parent=0
    #allocation3 [shape = 'u8[155648]{0}', space=vmem, size = 0x26000, scoped, tag = 'input window, operand 0']
    #allocation4 [shape = 's32[2]{0}', space=sflag, size = 0x8, scoped, tag = 'scoped memory for tpu_custom_call.1']
    #allocation5 [shape = 's32[2]{0}', space=sflag, size = 0x8, scoped, tag = 'scoped memory for tpu_custom_call.1']
    #allocation6 [shape = 'u8[262144]{0}', space=vmem, size = 0x40000, scoped, tag = 'output window, operand 0']
    %8 = vsyncpa [#allocation4], 0
    %s9 = scalar_lea.sflag [#allocation4], 1
    %10 = vsyncpa %s9, 0
    %11 = vsyncpa [#allocation5], 0
    %s12 = scalar_lea.sflag [#allocation5], 1
    %13 = vsyncpa %s12, 0
    loop: start=0, step=1, limit=4
    $region2: #{tpu_custom_call.1} parent=1 // loop_pre_header
      _
    $region3: #{tpu_custom_call.1} parent=1 // loop_header
      %s15 = sphi 0, %s19
      %p16 = scmp.ge.s32.totalorder %s15, 4
      %s25 = sphi 0, %s27
      %s28 = sphi 0, %s25
      %s29 = sphi 0, %s28
      %s45 = sphi 0, %s29
      %s49 = sphi 0, %s49
      %s51 = sphi 0, %s49
      %s52 = sphi 0, %s51
      %s66 = sphi 0, %s52
      %s70 = sphi 0, %s70
      %s72 = sphi 0, %s70
      %s73 = sphi 0, %s72
      %s87 = sphi 0, %s73
      %s93 = sphi 0, %s95
      %s96 = sphi 0, %s93
      %s97 = sphi 0, %s96
      %s113 = sphi 0, %s97
    $region4: #{tpu_custom_call.1} parent=1 // loop_header_branch
      %18 = sbr.rel (%p16) target = $region8
    $region5: #{tpu_custom_call.1} parent=1 // loop_body
      %s20 = ssub.s32 %s15, 1
      %s21 = ssub.s32 %s15, 2
      %s22 = sadd.s32 %s15, 1
      %s23 = ssub.s32 %s15, %s22
      %p24 = scmp.eq.s32.totalorder %s23, 0
      %s26 = sadd.s32 %s25, 1
      %s27 = scalar_select %p24, %s25, %s26
      %p30 = pneg %p24
      %p31 = scmp.eq.s32.totalorder %s15, 1
      %p32 = por %p30, %p31
      %p33 = scmp.ne.s32.totalorder %s25, %s28
      %p34 = scmp.eq.s32.totalorder %s15, 0
      %p35 = por %p33, %p34
      %p36 = scmp.ne.s32.totalorder %s25, %s28
      %p37 = scmp.eq.s32.totalorder %s20, 1
      %p38 = por %p36, %p37
      %p39 = scmp.ne.s32.totalorder %s28, %s29
      %p40 = scmp.eq.s32.totalorder %s20, 0
      %p41 = por %p39, %p40
      %p42 = scmp.ne.s32.totalorder %s28, %s29
      %p43 = scmp.eq.s32.totalorder %s21, 1
      %p44 = por %p42, %p43
      %p46 = scmp.ne.s32.totalorder %s29, %s45
      %p47 = scmp.eq.s32.totalorder %s21, 0
      %p48 = por %p46, %p47
      %s50 = sadd.s32 %s49, 1
      %p53 = scmp.eq.s32.totalorder %s15, 1
      %p54 = scmp.ne.s32.totalorder %s49, %s51
      %p55 = scmp.eq.s32.totalorder %s15, 0
      %p56 = por %p54, %p55
      %p57 = scmp.ne.s32.totalorder %s49, %s51
      %p58 = scmp.eq.s32.totalorder %s20, 1
      %p59 = por %p57, %p58
      %p60 = scmp.ne.s32.totalorder %s51, %s52
      %p61 = scmp.eq.s32.totalorder %s20, 0
      %p62 = por %p60, %p61
      %p63 = scmp.ne.s32.totalorder %s51, %s52
      %p64 = scmp.eq.s32.totalorder %s21, 1
      %p65 = por %p63, %p64
      %p67 = scmp.ne.s32.totalorder %s52, %s66
      %p68 = scmp.eq.s32.totalorder %s21, 0
      %p69 = por %p67, %p68
      %s71 = sadd.s32 %s70, 1
      %p74 = scmp.eq.s32.totalorder %s15, 1
      %p75 = scmp.ne.s32.totalorder %s70, %s72
      %p76 = scmp.eq.s32.totalorder %s15, 0
      %p77 = por %p75, %p76
      %p78 = scmp.ne.s32.totalorder %s70, %s72
      %p79 = scmp.eq.s32.totalorder %s20, 1
      %p80 = por %p78, %p79
      %p81 = scmp.ne.s32.totalorder %s72, %s73
      %p82 = scmp.eq.s32.totalorder %s20, 0
      %p83 = por %p81, %p82
      %p84 = scmp.ne.s32.totalorder %s72, %s73
      %p85 = scmp.eq.s32.totalorder %s21, 1
      %p86 = por %p84, %p85
      %p88 = scmp.ne.s32.totalorder %s73, %s87
      %p89 = scmp.eq.s32.totalorder %s21, 0
      %p90 = por %p88, %p89
      %s91 = ssub.s32 %s15, %s22
      %p92 = scmp.eq.s32.totalorder %s91, 0
      %s94 = sadd.s32 %s93, 1
      %s95 = scalar_select %p92, %s93, %s94
      %p98 = pneg %p92
      %p99 = scmp.eq.s32.totalorder %s15, 1
      %p100 = por %p98, %p99
      %p101 = scmp.ne.s32.totalorder %s93, %s96
      %p102 = scmp.eq.s32.totalorder %s15, 0
      %p103 = por %p101, %p102
      %p104 = scmp.ne.s32.totalorder %s93, %s96
      %p105 = scmp.eq.s32.totalorder %s20, 1
      %p106 = por %p104, %p105
      %p107 = scmp.ne.s32.totalorder %s96, %s97
      %p108 = scmp.eq.s32.totalorder %s20, 0
      %p109 = por %p107, %p108
      %p110 = scmp.ne.s32.totalorder %s96, %s97
      %p111 = scmp.eq.s32.totalorder %s21, 1
      %p112 = por %p110, %p111
      %p114 = scmp.ne.s32.totalorder %s97, %s113
      %p115 = scmp.eq.s32.totalorder %s21, 0
      %p116 = por %p114, %p115
      %p117 = scmp.le.s32.totalorder 1, %s15
      %p118 = scmp.lt.s32.totalorder %s15, 3
      %p119 = pnand %p117, %p118
      %p120 = pneg %p119
      // Predicated region
      $region9: #{tpu_custom_call.1} parent=5 // pred_check
        _
      $region10: #{tpu_custom_call.1} parent=5 // pred_check_branch
        %122 = sbr.rel (%p119) target = $region12
      $region11: #{tpu_custom_call.1} parent=5 // pred_region
        %s123 = ssub.s32 %s15, 1
        // Predicated region
        $region13: #{tpu_custom_call.1} parent=11 // pred_check
          %p124 = pneg %p62
        $region14: #{tpu_custom_call.1} parent=11 // pred_check_branch
          %126 = sbr.rel (%p124) target = $region16
        $region15: #{tpu_custom_call.1} parent=11 // pred_region
          _
        $region16: #{tpu_custom_call.1} parent=11 // pred_fallthru
          _
        // Predicated region
        $region17: #{tpu_custom_call.1} parent=11 // pred_check
          %p127 = pneg %p83
        $region18: #{tpu_custom_call.1} parent=11 // pred_check_branch
          %129 = sbr.rel (%p127) target = $region20
        $region19: #{tpu_custom_call.1} parent=11 // pred_region
          _
        $region20: #{tpu_custom_call.1} parent=11 // pred_fallthru
          _
      $region12: #{tpu_custom_call.1} parent=5 // pred_fallthru
        _
      %p130 = scmp.lt.s32.totalorder %s15, 2
      // Predicated region
      $region21: #{tpu_custom_call.1} parent=5 // pred_check
        %p131 = pneg %p130
      $region22: #{tpu_custom_call.1} parent=5 // pred_check_branch
        %133 = sbr.rel (%p131) target = $region24
      $region23: #{tpu_custom_call.1} parent=5 // pred_region
        // Predicated region
        $region25: #{tpu_custom_call.1} parent=23 // pred_check
          %p134 = pneg %p35
        $region26: #{tpu_custom_call.1} parent=23 // pred_check_branch
          %136 = sbr.rel (%p134) target = $region28
        $region27: #{tpu_custom_call.1} parent=23 // pred_region
          %s137 = sand.u32 %s25, 1
          %s138 = scalar_lea.sflag [#allocation4], %s137
          %s139 = sand.u32 %s25, 1
          %s140 = smul.addr %s139, 152
          %s141 = scalar_lea.vmem [#allocation3], %s140
          %s143 = ssub.s32 2432, 2432
          %144 = vsyncadd %s138, %s143
          %s145 = smul.addr %s15, 19
          %s146 = smul.addr %s145, 128
          %s147 = scalar_lea.hbm %s0, %s146
          %s149 = sshll.u32 %s141, 4
          %s150 = int_to_ptr.vmem [resolvable:$true] %s149
          %152 = dma.hbm_to_vmem [thread:$0]  %s147, 2432, %s150, %s138
        $region28: #{tpu_custom_call.1} parent=23 // pred_fallthru
          _
      $region24: #{tpu_custom_call.1} parent=5 // pred_fallthru
        _
      %p153 = scmp.le.s32.totalorder 1, %s15
      %p154 = scmp.lt.s32.totalorder %s15, 3
      %p155 = pnand %p153, %p154
      %p156 = pneg %p155
      // Predicated region
      $region29: #{tpu_custom_call.1} parent=5 // pred_check
        _
      $region30: #{tpu_custom_call.1} parent=5 // pred_check_branch
        %158 = sbr.rel (%p155) target = $region32
      $region31: #{tpu_custom_call.1} parent=5 // pred_region
        %s159 = ssub.s32 %s15, 1
        %s160 = sand.u32 %s28, 1
        %s161 = scalar_lea.sflag [#allocation4], %s160
        %s162 = sand.u32 %s28, 1
        %s163 = smul.addr %s162, 152
        %s164 = scalar_lea.vmem [#allocation3], %s163
        // Predicated region
        $region33: #{tpu_custom_call.1} parent=31 // pred_check
          %p165 = pneg %p41
        $region34: #{tpu_custom_call.1} parent=31 // pred_check_branch
          %167 = sbr.rel (%p165) target = $region36
        $region35: #{tpu_custom_call.1} parent=31 // pred_region
          %168 = dma.done %s161, 2432
        $region36: #{tpu_custom_call.1} parent=31 // pred_fallthru
          _
        %s169 = sand.u32 %s28, 1
        %s170 = scalar_lea.sflag [#allocation4], %s169
        %s171 = sand.u32 %s28, 1
        %s172 = smul.addr %s171, 152
        %s173 = scalar_lea.vmem [#allocation3], %s172
        %p174 = pneg %p41
        %p175 = pneg %p38
        %p176 = pneg %p62
        %p177 = pneg %p59
        %p178 = pneg %p83
        %p179 = pneg %p80
        %p180 = pneg %p109
        %p181 = pneg %p106
        %s182 = sand.u32 %s96, 1
        %s183 = scalar_lea.sflag [#allocation5], %s182
        %s184 = sand.u32 %s96, 1
        %s185 = smul.addr %s184, 256
        %s186 = scalar_lea.vmem [#allocation6], %s185
        %v187 = vld [vmem:[%s164] sm:$0xff]
        %v188 = vld [vmem:[%s164 + $0x8] sm:$0xff]
        %v189 = vld [vmem:[%s164 + $0x10] sm:$0xff]
        %v190 = vld [vmem:[%s164 + $0x18] sm:$0xff]
        %v191 = vld [vmem:[%s164 + $0x20] sm:$0xff]
        %v192 = vld [vmem:[%s164 + $0x28] sm:$0xff]
        %v193 = vld [vmem:[%s164 + $0x30] sm:$0xff]
        %v194 = vld [vmem:[%s164 + $0x38] sm:$0xff]
        %v195 = vld [vmem:[%s164 + $0x40] sm:$0xff]
        %v196 = vld [vmem:[%s164 + $0x48] sm:$0xff]
        %v197 = vld [vmem:[%s164 + $0x50] sm:$0xff]
        %v198 = vld [vmem:[%s164 + $0x58] sm:$0xff]
        %v199 = vld [vmem:[%s164 + $0x60] sm:$0xff]
        %v200 = vld [vmem:[%s164 + $0x68] sm:$0xff]
        %v201 = vld [vmem:[%s164 + $0x70] sm:$0xff]
        %v202 = vld [vmem:[%s164 + $0x78] sm:$0xff]
        %v203 = vld [vmem:[%s164 + $0x80] sm:$0xff]
        %v204 = vld [vmem:[%s164 + $0x88] sm:$0xff]
        %v205 = vld [vmem:[%s164 + $0x90] sm:$0xff]
        %206 = vst [vmem:[#allocation2] sm:$0xff] %v187
        %207 = vst [vmem:[#allocation2 + $0x8] sm:$0xff] %v188
        %208 = vst [vmem:[#allocation2 + $0x10] sm:$0xff] %v189
        %209 = vst [vmem:[#allocation2 + $0x18] sm:$0xff] %v190
        %210 = vst [vmem:[#allocation2 + $0x20] sm:$0xff] %v191
        %211 = vst [vmem:[#allocation2 + $0x28] sm:$0xff] %v192
        %212 = vst [vmem:[#allocation2 + $0x30] sm:$0xff] %v193
        %213 = vst [vmem:[#allocation2 + $0x38] sm:$0xff] %v194
        %214 = vst [vmem:[#allocation2 + $0x40] sm:$0xff] %v195
        %215 = vst [vmem:[#allocation2 + $0x48] sm:$0xff] %v196
        %216 = vst [vmem:[#allocation2 + $0x50] sm:$0xff] %v197
        %217 = vst [vmem:[#allocation2 + $0x58] sm:$0xff] %v198
        %218 = vst [vmem:[#allocation2 + $0x60] sm:$0xff] %v199
        %219 = vst [vmem:[#allocation2 + $0x68] sm:$0xff] %v200
        %220 = vst [vmem:[#allocation2 + $0x70] sm:$0xff] %v201
        %221 = vst [vmem:[#allocation2 + $0x78] sm:$0xff] %v202
        %239 = vrot.lane.b32.xlu0 %v187, 127
        %v240 = vpop.permute.xlu0 %239
        %241 = vrot.lane.b32.xlu0 %v188, 127
        %v242 = vpop.permute.xlu0 %241
        %243 = vrot.lane.b32.xlu0 %v189, 127
        %v244 = vpop.permute.xlu0 %243
        %245 = vrot.lane.b32.xlu0 %v190, 127
        %v246 = vpop.permute.xlu0 %245
        %247 = vrot.lane.b32.xlu0 %v191, 127
        %v248 = vpop.permute.xlu0 %247
        %249 = vrot.lane.b32.xlu0 %v192, 127
        %v250 = vpop.permute.xlu0 %249
        %251 = vrot.lane.b32.xlu0 %v193, 127
        %v252 = vpop.permute.xlu0 %251
        %253 = vrot.lane.b32.xlu0 %v194, 127
        %v254 = vpop.permute.xlu0 %253
        %255 = vrot.lane.b32.xlu0 %v195, 127
        %v256 = vpop.permute.xlu0 %255
        %257 = vrot.lane.b32.xlu0 %v196, 127
        %v258 = vpop.permute.xlu0 %257
        %259 = vrot.lane.b32.xlu0 %v197, 127
        %v260 = vpop.permute.xlu0 %259
        %261 = vrot.lane.b32.xlu0 %v198, 127
        %v262 = vpop.permute.xlu0 %261
        %263 = vrot.lane.b32.xlu0 %v199, 127
        %v264 = vpop.permute.xlu0 %263
        %265 = vrot.lane.b32.xlu0 %v200, 127
        %v266 = vpop.permute.xlu0 %265
        %267 = vrot.lane.b32.xlu0 %v201, 127
        %v268 = vpop.permute.xlu0 %267
        %269 = vrot.lane.b32.xlu0 %v202, 127
        %v270 = vpop.permute.xlu0 %269
        %271 = vrot.lane.b32.xlu0 %v203, 127
        %v272 = vpop.permute.xlu0 %271
        %vm273 = vcmask 1039360
        %v274 = vsel %vm273, %v240, %v242
        %v275 = vsel %vm273, %v242, %v244
        %v276 = vsel %vm273, %v244, %v246
        %v277 = vsel %vm273, %v246, %v248
        %v278 = vsel %vm273, %v248, %v250
        %v279 = vsel %vm273, %v250, %v252
        %v280 = vsel %vm273, %v252, %v254
        %v281 = vsel %vm273, %v254, %v256
        %v282 = vsel %vm273, %v256, %v258
        %v283 = vsel %vm273, %v258, %v260
        %v284 = vsel %vm273, %v260, %v262
        %v285 = vsel %vm273, %v262, %v264
        %v286 = vsel %vm273, %v264, %v266
        %v287 = vsel %vm273, %v266, %v268
        %v288 = vsel %vm273, %v268, %v270
        %v289 = vsel %vm273, %v270, %v272
        %306 = vst [vmem:[#allocation2 + $0x80] sm:$0xff] %v274
        %307 = vst [vmem:[#allocation2 + $0x88] sm:$0xff] %v275
        %308 = vst [vmem:[#allocation2 + $0x90] sm:$0xff] %v276
        %309 = vst [vmem:[#allocation2 + $0x98] sm:$0xff] %v277
        %310 = vst [vmem:[#allocation2 + $0xa0] sm:$0xff] %v278
        %311 = vst [vmem:[#allocation2 + $0xa8] sm:$0xff] %v279
        %312 = vst [vmem:[#allocation2 + $0xb0] sm:$0xff] %v280
        %313 = vst [vmem:[#allocation2 + $0xb8] sm:$0xff] %v281
        %314 = vst [vmem:[#allocation2 + $0xc0] sm:$0xff] %v282
        %315 = vst [vmem:[#allocation2 + $0xc8] sm:$0xff] %v283
        %316 = vst [vmem:[#allocation2 + $0xd0] sm:$0xff] %v284
        %317 = vst [vmem:[#allocation2 + $0xd8] sm:$0xff] %v285
        %318 = vst [vmem:[#allocation2 + $0xe0] sm:$0xff] %v286
        %319 = vst [vmem:[#allocation2 + $0xe8] sm:$0xff] %v287
        %320 = vst [vmem:[#allocation2 + $0xf0] sm:$0xff] %v288
        %321 = vst [vmem:[#allocation2 + $0xf8] sm:$0xff] %v289
        %322 = vrot.lane.b32.xlu0 %v187, 126
        %v323 = vpop.permute.xlu0 %322
        %324 = vrot.lane.b32.xlu0 %v188, 126
        %v325 = vpop.permute.xlu0 %324
        %326 = vrot.lane.b32.xlu0 %v189, 126
        %v327 = vpop.permute.xlu0 %326
        %328 = vrot.lane.b32.xlu0 %v190, 126
        %v329 = vpop.permute.xlu0 %328
        %330 = vrot.lane.b32.xlu0 %v191, 126
        %v331 = vpop.permute.xlu0 %330
        %332 = vrot.lane.b32.xlu0 %v192, 126
        %v333 = vpop.permute.xlu0 %332
        %334 = vrot.lane.b32.xlu0 %v193, 126
        %v335 = vpop.permute.xlu0 %334
        %336 = vrot.lane.b32.xlu0 %v194, 126
        %v337 = vpop.permute.xlu0 %336
        %338 = vrot.lane.b32.xlu0 %v195, 126
        %v339 = vpop.permute.xlu0 %338
        %340 = vrot.lane.b32.xlu0 %v196, 126
        %v341 = vpop.permute.xlu0 %340
        %342 = vrot.lane.b32.xlu0 %v197, 126
        %v343 = vpop.permute.xlu0 %342
        %344 = vrot.lane.b32.xlu0 %v198, 126
        %v345 = vpop.permute.xlu0 %344
        %346 = vrot.lane.b32.xlu0 %v199, 126
        %v347 = vpop.permute.xlu0 %346
        %348 = vrot.lane.b32.xlu0 %v200, 126
        %v349 = vpop.permute.xlu0 %348
        %350 = vrot.lane.b32.xlu0 %v201, 126
        %v351 = vpop.permute.xlu0 %350
        %352 = vrot.lane.b32.xlu0 %v202, 126
        %v353 = vpop.permute.xlu0 %352
        %354 = vrot.lane.b32.xlu0 %v203, 126
        %v355 = vpop.permute.xlu0 %354
        %vm356 = vcmask 1031168
        %v357 = vsel %vm356, %v323, %v325
        %v358 = vsel %vm356, %v325, %v327
        %v359 = vsel %vm356, %v327, %v329
        %v360 = vsel %vm356, %v329, %v331
        %v361 = vsel %vm356, %v331, %v333
        %v362 = vsel %vm356, %v333, %v335
        %v363 = vsel %vm356, %v335, %v337
        %v364 = vsel %vm356, %v337, %v339
        %v365 = vsel %vm356, %v339, %v341
        %v366 = vsel %vm356, %v341, %v343
        %v367 = vsel %vm356, %v343, %v345
        %v368 = vsel %vm356, %v345, %v347
        %v369 = vsel %vm356, %v347, %v349
        %v370 = vsel %vm356, %v349, %v351
        %v371 = vsel %vm356, %v351, %v353
        %v372 = vsel %vm356, %v353, %v355
        %389 = vst [vmem:[#allocation2 + $0x100] sm:$0xff] %v357
        %390 = vst [vmem:[#allocation2 + $0x108] sm:$0xff] %v358
        %391 = vst [vmem:[#allocation2 + $0x110] sm:$0xff] %v359
        %392 = vst [vmem:[#allocation2 + $0x118] sm:$0xff] %v360
        %393 = vst [vmem:[#allocation2 + $0x120] sm:$0xff] %v361
        %394 = vst [vmem:[#allocation2 + $0x128] sm:$0xff] %v362
        %395 = vst [vmem:[#allocation2 + $0x130] sm:$0xff] %v363
        %396 = vst [vmem:[#allocation2 + $0x138] sm:$0xff] %v364
        %397 = vst [vmem:[#allocation2 + $0x140] sm:$0xff] %v365
        %398 = vst [vmem:[#allocation2 + $0x148] sm:$0xff] %v366
        %399 = vst [vmem:[#allocation2 + $0x150] sm:$0xff] %v367
        %400 = vst [vmem:[#allocation2 + $0x158] sm:$0xff] %v368
        %401 = vst [vmem:[#allocation2 + $0x160] sm:$0xff] %v369
        %402 = vst [vmem:[#allocation2 + $0x168] sm:$0xff] %v370
        %403 = vst [vmem:[#allocation2 + $0x170] sm:$0xff] %v371
        %404 = vst [vmem:[#allocation2 + $0x178] sm:$0xff] %v372
        %405 = vst [vmem:[#allocation2 + $0x180] sm:$0xff] %v188
        %406 = vst [vmem:[#allocation2 + $0x188] sm:$0xff] %v189
        %407 = vst [vmem:[#allocation2 + $0x190] sm:$0xff] %v190
        %408 = vst [vmem:[#allocation2 + $0x198] sm:$0xff] %v191
        %409 = vst [vmem:[#allocation2 + $0x1a0] sm:$0xff] %v192
        %410 = vst [vmem:[#allocation2 + $0x1a8] sm:$0xff] %v193
        %411 = vst [vmem:[#allocation2 + $0x1b0] sm:$0xff] %v194
        %412 = vst [vmem:[#allocation2 + $0x1b8] sm:$0xff] %v195
        %413 = vst [vmem:[#allocation2 + $0x1c0] sm:$0xff] %v196
        %414 = vst [vmem:[#allocation2 + $0x1c8] sm:$0xff] %v197
        %415 = vst [vmem:[#allocation2 + $0x1d0] sm:$0xff] %v198
        %416 = vst [vmem:[#allocation2 + $0x1d8] sm:$0xff] %v199
        %417 = vst [vmem:[#allocation2 + $0x1e0] sm:$0xff] %v200
        %418 = vst [vmem:[#allocation2 + $0x1e8] sm:$0xff] %v201
        %419 = vst [vmem:[#allocation2 + $0x1f0] sm:$0xff] %v202
        %420 = vst [vmem:[#allocation2 + $0x1f8] sm:$0xff] %v203
        %422 = vrot.lane.b32.xlu0 %v204, 127
        %v423 = vpop.permute.xlu0 %422
        %v424 = vsel %vm273, %v272, %v423
        %426 = vst [vmem:[#allocation2 + $0x200] sm:$0xff] %v275
        %427 = vst [vmem:[#allocation2 + $0x208] sm:$0xff] %v276
        %428 = vst [vmem:[#allocation2 + $0x210] sm:$0xff] %v277
        %429 = vst [vmem:[#allocation2 + $0x218] sm:$0xff] %v278
        %430 = vst [vmem:[#allocation2 + $0x220] sm:$0xff] %v279
        %431 = vst [vmem:[#allocation2 + $0x228] sm:$0xff] %v280
        %432 = vst [vmem:[#allocation2 + $0x230] sm:$0xff] %v281
        %433 = vst [vmem:[#allocation2 + $0x238] sm:$0xff] %v282
        %434 = vst [vmem:[#allocation2 + $0x240] sm:$0xff] %v283
        %435 = vst [vmem:[#allocation2 + $0x248] sm:$0xff] %v284
        %436 = vst [vmem:[#allocation2 + $0x250] sm:$0xff] %v285
        %437 = vst [vmem:[#allocation2 + $0x258] sm:$0xff] %v286
        %438 = vst [vmem:[#allocation2 + $0x260] sm:$0xff] %v287
        %439 = vst [vmem:[#allocation2 + $0x268] sm:$0xff] %v288
        %440 = vst [vmem:[#allocation2 + $0x270] sm:$0xff] %v289
        %441 = vst [vmem:[#allocation2 + $0x278] sm:$0xff] %v424
        %442 = vrot.lane.b32.xlu0 %v204, 126
        %v443 = vpop.permute.xlu0 %442
        %v444 = vsel %vm356, %v355, %v443
        %446 = vst [vmem:[#allocation2 + $0x280] sm:$0xff] %v358
        %447 = vst [vmem:[#allocation2 + $0x288] sm:$0xff] %v359
        %448 = vst [vmem:[#allocation2 + $0x290] sm:$0xff] %v360
        %449 = vst [vmem:[#allocation2 + $0x298] sm:$0xff] %v361
        %450 = vst [vmem:[#allocation2 + $0x2a0] sm:$0xff] %v362
        %451 = vst [vmem:[#allocation2 + $0x2a8] sm:$0xff] %v363
        %452 = vst [vmem:[#allocation2 + $0x2b0] sm:$0xff] %v364
        %453 = vst [vmem:[#allocation2 + $0x2b8] sm:$0xff] %v365
        %454 = vst [vmem:[#allocation2 + $0x2c0] sm:$0xff] %v366
        %455 = vst [vmem:[#allocation2 + $0x2c8] sm:$0xff] %v367
        %456 = vst [vmem:[#allocation2 + $0x2d0] sm:$0xff] %v368
        %457 = vst [vmem:[#allocation2 + $0x2d8] sm:$0xff] %v369
        %458 = vst [vmem:[#allocation2 + $0x2e0] sm:$0xff] %v370
        %459 = vst [vmem:[#allocation2 + $0x2e8] sm:$0xff] %v371
        %460 = vst [vmem:[#allocation2 + $0x2f0] sm:$0xff] %v372
        %461 = vst [vmem:[#allocation2 + $0x2f8] sm:$0xff] %v444
        %462 = vst [vmem:[#allocation2 + $0x300] sm:$0xff] %v189
        %463 = vst [vmem:[#allocation2 + $0x308] sm:$0xff] %v190
        %464 = vst [vmem:[#allocation2 + $0x310] sm:$0xff] %v191
        %465 = vst [vmem:[#allocation2 + $0x318] sm:$0xff] %v192
        %466 = vst [vmem:[#allocation2 + $0x320] sm:$0xff] %v193
        %467 = vst [vmem:[#allocation2 + $0x328] sm:$0xff] %v194
        %468 = vst [vmem:[#allocation2 + $0x330] sm:$0xff] %v195
        %469 = vst [vmem:[#allocation2 + $0x338] sm:$0xff] %v196
        %470 = vst [vmem:[#allocation2 + $0x340] sm:$0xff] %v197
        %471 = vst [vmem:[#allocation2 + $0x348] sm:$0xff] %v198
        %472 = vst [vmem:[#allocation2 + $0x350] sm:$0xff] %v199
        %473 = vst [vmem:[#allocation2 + $0x358] sm:$0xff] %v200
        %474 = vst [vmem:[#allocation2 + $0x360] sm:$0xff] %v201
        %475 = vst [vmem:[#allocation2 + $0x368] sm:$0xff] %v202
        %476 = vst [vmem:[#allocation2 + $0x370] sm:$0xff] %v203
        %477 = vst [vmem:[#allocation2 + $0x378] sm:$0xff] %v204
        %479 = vrot.lane.b32.xlu0 %v205, 127
        %v480 = vpop.permute.xlu0 %479
        %v481 = vsel %vm273, %v423, %v480
        %483 = vst [vmem:[#allocation2 + $0x380] sm:$0xff] %v276
        %484 = vst [vmem:[#allocation2 + $0x388] sm:$0xff] %v277
        %485 = vst [vmem:[#allocation2 + $0x390] sm:$0xff] %v278
        %486 = vst [vmem:[#allocation2 + $0x398] sm:$0xff] %v279
        %487 = vst [vmem:[#allocation2 + $0x3a0] sm:$0xff] %v280
        %488 = vst [vmem:[#allocation2 + $0x3a8] sm:$0xff] %v281
        %489 = vst [vmem:[#allocation2 + $0x3b0] sm:$0xff] %v282
        %490 = vst [vmem:[#allocation2 + $0x3b8] sm:$0xff] %v283
        %491 = vst [vmem:[#allocation2 + $0x3c0] sm:$0xff] %v284
        %492 = vst [vmem:[#allocation2 + $0x3c8] sm:$0xff] %v285
        %493 = vst [vmem:[#allocation2 + $0x3d0] sm:$0xff] %v286
        %494 = vst [vmem:[#allocation2 + $0x3d8] sm:$0xff] %v287
        %495 = vst [vmem:[#allocation2 + $0x3e0] sm:$0xff] %v288
        %496 = vst [vmem:[#allocation2 + $0x3e8] sm:$0xff] %v289
        %497 = vst [vmem:[#allocation2 + $0x3f0] sm:$0xff] %v424
        %498 = vst [vmem:[#allocation2 + $0x3f8] sm:$0xff] %v481
        %499 = vrot.lane.b32.xlu0 %v205, 126
        %v500 = vpop.permute.xlu0 %499
        %v501 = vsel %vm356, %v443, %v500
        %503 = vst [vmem:[#allocation2 + $0x400] sm:$0xff] %v359
        %504 = vst [vmem:[#allocation2 + $0x408] sm:$0xff] %v360
        %505 = vst [vmem:[#allocation2 + $0x410] sm:$0xff] %v361
        %506 = vst [vmem:[#allocation2 + $0x418] sm:$0xff] %v362
        %507 = vst [vmem:[#allocation2 + $0x420] sm:$0xff] %v363
        %508 = vst [vmem:[#allocation2 + $0x428] sm:$0xff] %v364
        %509 = vst [vmem:[#allocation2 + $0x430] sm:$0xff] %v365
        %510 = vst [vmem:[#allocation2 + $0x438] sm:$0xff] %v366
        %511 = vst [vmem:[#allocation2 + $0x440] sm:$0xff] %v367
        %512 = vst [vmem:[#allocation2 + $0x448] sm:$0xff] %v368
        %513 = vst [vmem:[#allocation2 + $0x450] sm:$0xff] %v369
        %514 = vst [vmem:[#allocation2 + $0x458] sm:$0xff] %v370
        %515 = vst [vmem:[#allocation2 + $0x460] sm:$0xff] %v371
        %516 = vst [vmem:[#allocation2 + $0x468] sm:$0xff] %v372
        %517 = vst [vmem:[#allocation2 + $0x470] sm:$0xff] %v444
        %518 = vst [vmem:[#allocation2 + $0x478] sm:$0xff] %v501
        %v519 = vld [vmem:[%s1] sm:$0xff]
        %v520 = vld [vmem:[%s1 + $0x8] sm:$0xff]
        %v521 = vld [vmem:[#allocation2] sm:$0xff]
        %v522 = vld [vmem:[#allocation2 + $0x8] sm:$0xff]
        %v523 = vld [vmem:[#allocation2 + $0x10] sm:$0xff]
        %v524 = vld [vmem:[#allocation2 + $0x18] sm:$0xff]
        %v525 = vld [vmem:[#allocation2 + $0x20] sm:$0xff]
        %v526 = vld [vmem:[#allocation2 + $0x28] sm:$0xff]
        %v527 = vld [vmem:[#allocation2 + $0x30] sm:$0xff]
        %v528 = vld [vmem:[#allocation2 + $0x38] sm:$0xff]
        %v529 = vld [vmem:[#allocation2 + $0x40] sm:$0xff]
        %v530 = vld [vmem:[#allocation2 + $0x48] sm:$0xff]
        %v531 = vld [vmem:[#allocation2 + $0x50] sm:$0xff]
        %v532 = vld [vmem:[#allocation2 + $0x58] sm:$0xff]
        %v533 = vld [vmem:[#allocation2 + $0x60] sm:$0xff]
        %v534 = vld [vmem:[#allocation2 + $0x68] sm:$0xff]
        %v535 = vld [vmem:[#allocation2 + $0x70] sm:$0xff]
        %v536 = vld [vmem:[#allocation2 + $0x78] sm:$0xff]
        %v537 = vld [vmem:[#allocation2 + $0x80] sm:$0xff]
        %v538 = vld [vmem:[#allocation2 + $0x88] sm:$0xff]
        %v539 = vld [vmem:[#allocation2 + $0x90] sm:$0xff]
        %v540 = vld [vmem:[#allocation2 + $0x98] sm:$0xff]
        %v541 = vld [vmem:[#allocation2 + $0xa0] sm:$0xff]
        %v542 = vld [vmem:[#allocation2 + $0xa8] sm:$0xff]
        %v543 = vld [vmem:[#allocation2 + $0xb0] sm:$0xff]
        %v544 = vld [vmem:[#allocation2 + $0xb8] sm:$0xff]
        %v545 = vld [vmem:[#allocation2 + $0xc0] sm:$0xff]
        %v546 = vld [vmem:[#allocation2 + $0xc8] sm:$0xff]
        %v547 = vld [vmem:[#allocation2 + $0xd0] sm:$0xff]
        %v548 = vld [vmem:[#allocation2 + $0xd8] sm:$0xff]
        %v549 = vld [vmem:[#allocation2 + $0xe0] sm:$0xff]
        %v550 = vld [vmem:[#allocation2 + $0xe8] sm:$0xff]
        %v551 = vld [vmem:[#allocation2 + $0xf0] sm:$0xff]
        %v552 = vld [vmem:[#allocation2 + $0xf8] sm:$0xff]
        %v553 = vld [vmem:[#allocation2 + $0x100] sm:$0xff]
        %v554 = vld [vmem:[#allocation2 + $0x108] sm:$0xff]
        %v555 = vld [vmem:[#allocation2 + $0x110] sm:$0xff]
        %v556 = vld [vmem:[#allocation2 + $0x118] sm:$0xff]
        %v557 = vld [vmem:[#allocation2 + $0x120] sm:$0xff]
        %v558 = vld [vmem:[#allocation2 + $0x128] sm:$0xff]
        %v559 = vld [vmem:[#allocation2 + $0x130] sm:$0xff]
        %v560 = vld [vmem:[#allocation2 + $0x138] sm:$0xff]
        %v561 = vld [vmem:[#allocation2 + $0x140] sm:$0xff]
        %v562 = vld [vmem:[#allocation2 + $0x148] sm:$0xff]
        %v563 = vld [vmem:[#allocation2 + $0x150] sm:$0xff]
        %v564 = vld [vmem:[#allocation2 + $0x158] sm:$0xff]
        %v565 = vld [vmem:[#allocation2 + $0x160] sm:$0xff]
        %v566 = vld [vmem:[#allocation2 + $0x168] sm:$0xff]
        %v567 = vld [vmem:[#allocation2 + $0x170] sm:$0xff]
        %v568 = vld [vmem:[#allocation2 + $0x178] sm:$0xff]
        %v569 = vld [vmem:[#allocation2 + $0x180] sm:$0xff]
        %v570 = vld [vmem:[#allocation2 + $0x188] sm:$0xff]
        %v571 = vld [vmem:[#allocation2 + $0x190] sm:$0xff]
        %v572 = vld [vmem:[#allocation2 + $0x198] sm:$0xff]
        %v573 = vld [vmem:[#allocation2 + $0x1a0] sm:$0xff]
        %v574 = vld [vmem:[#allocation2 + $0x1a8] sm:$0xff]
        %v575 = vld [vmem:[#allocation2 + $0x1b0] sm:$0xff]
        %v576 = vld [vmem:[#allocation2 + $0x1b8] sm:$0xff]
        %v577 = vld [vmem:[#allocation2 + $0x1c0] sm:$0xff]
        %v578 = vld [vmem:[#allocation2 + $0x1c8] sm:$0xff]
        %v579 = vld [vmem:[#allocation2 + $0x1d0] sm:$0xff]
        %v580 = vld [vmem:[#allocation2 + $0x1d8] sm:$0xff]
        %v581 = vld [vmem:[#allocation2 + $0x1e0] sm:$0xff]
        %v582 = vld [vmem:[#allocation2 + $0x1e8] sm:$0xff]
        %v583 = vld [vmem:[#allocation2 + $0x1f0] sm:$0xff]
        %v584 = vld [vmem:[#allocation2 + $0x1f8] sm:$0xff]
        %v585 = vld [vmem:[#allocation2 + $0x200] sm:$0xff]
        %v586 = vld [vmem:[#allocation2 + $0x208] sm:$0xff]
        %v587 = vld [vmem:[#allocation2 + $0x210] sm:$0xff]
        %v588 = vld [vmem:[#allocation2 + $0x218] sm:$0xff]
        %v589 = vld [vmem:[#allocation2 + $0x220] sm:$0xff]
        %v590 = vld [vmem:[#allocation2 + $0x228] sm:$0xff]
        %v591 = vld [vmem:[#allocation2 + $0x230] sm:$0xff]
        %v592 = vld [vmem:[#allocation2 + $0x238] sm:$0xff]
        %v593 = vld [vmem:[#allocation2 + $0x240] sm:$0xff]
        %v594 = vld [vmem:[#allocation2 + $0x248] sm:$0xff]
        %v595 = vld [vmem:[#allocation2 + $0x250] sm:$0xff]
        %v596 = vld [vmem:[#allocation2 + $0x258] sm:$0xff]
        %v597 = vld [vmem:[#allocation2 + $0x260] sm:$0xff]
        %v598 = vld [vmem:[#allocation2 + $0x268] sm:$0xff]
        %v599 = vld [vmem:[#allocation2 + $0x270] sm:$0xff]
        %v600 = vld [vmem:[#allocation2 + $0x278] sm:$0xff]
        %v601 = vld [vmem:[#allocation2 + $0x280] sm:$0xff]
        %v602 = vld [vmem:[#allocation2 + $0x288] sm:$0xff]
        %v603 = vld [vmem:[#allocation2 + $0x290] sm:$0xff]
        %v604 = vld [vmem:[#allocation2 + $0x298] sm:$0xff]
        %v605 = vld [vmem:[#allocation2 + $0x2a0] sm:$0xff]
        %v606 = vld [vmem:[#allocation2 + $0x2a8] sm:$0xff]
        %v607 = vld [vmem:[#allocation2 + $0x2b0] sm:$0xff]
        %v608 = vld [vmem:[#allocation2 + $0x2b8] sm:$0xff]
        %v609 = vld [vmem:[#allocation2 + $0x2c0] sm:$0xff]
        %v610 = vld [vmem:[#allocation2 + $0x2c8] sm:$0xff]
        %v611 = vld [vmem:[#allocation2 + $0x2d0] sm:$0xff]
        %v612 = vld [vmem:[#allocation2 + $0x2d8] sm:$0xff]
        %v613 = vld [vmem:[#allocation2 + $0x2e0] sm:$0xff]
        %v614 = vld [vmem:[#allocation2 + $0x2e8] sm:$0xff]
        %v615 = vld [vmem:[#allocation2 + $0x2f0] sm:$0xff]
        %v616 = vld [vmem:[#allocation2 + $0x2f8] sm:$0xff]
        %v617 = vld [vmem:[#allocation2 + $0x300] sm:$0xff]
        %v618 = vld [vmem:[#allocation2 + $0x308] sm:$0xff]
        %v619 = vld [vmem:[#allocation2 + $0x310] sm:$0xff]
        %v620 = vld [vmem:[#allocation2 + $0x318] sm:$0xff]
        %v621 = vld [vmem:[#allocation2 + $0x320] sm:$0xff]
        %v622 = vld [vmem:[#allocation2 + $0x328] sm:$0xff]
        %v623 = vld [vmem:[#allocation2 + $0x330] sm:$0xff]
        %v624 = vld [vmem:[#allocation2 + $0x338] sm:$0xff]
        %v625 = vld [vmem:[#allocation2 + $0x340] sm:$0xff]
        %v626 = vld [vmem:[#allocation2 + $0x348] sm:$0xff]
        %v627 = vld [vmem:[#allocation2 + $0x350] sm:$0xff]
        %v628 = vld [vmem:[#allocation2 + $0x358] sm:$0xff]
        %v629 = vld [vmem:[#allocation2 + $0x360] sm:$0xff]
        %v630 = vld [vmem:[#allocation2 + $0x368] sm:$0xff]
        %v631 = vld [vmem:[#allocation2 + $0x370] sm:$0xff]
        %v632 = vld [vmem:[#allocation2 + $0x378] sm:$0xff]
        %v633 = vld [vmem:[#allocation2 + $0x380] sm:$0xff]
        %v634 = vld [vmem:[#allocation2 + $0x388] sm:$0xff]
        %v635 = vld [vmem:[#allocation2 + $0x390] sm:$0xff]
        %v636 = vld [vmem:[#allocation2 + $0x398] sm:$0xff]
        %v637 = vld [vmem:[#allocation2 + $0x3a0] sm:$0xff]
        %v638 = vld [vmem:[#allocation2 + $0x3a8] sm:$0xff]
        %v639 = vld [vmem:[#allocation2 + $0x3b0] sm:$0xff]
        %v640 = vld [vmem:[#allocation2 + $0x3b8] sm:$0xff]
        %v641 = vld [vmem:[#allocation2 + $0x3c0] sm:$0xff]
        %v642 = vld [vmem:[#allocation2 + $0x3c8] sm:$0xff]
        %v643 = vld [vmem:[#allocation2 + $0x3d0] sm:$0xff]
        %v644 = vld [vmem:[#allocation2 + $0x3d8] sm:$0xff]
        %v645 = vld [vmem:[#allocation2 + $0x3e0] sm:$0xff]
        %v646 = vld [vmem:[#allocation2 + $0x3e8] sm:$0xff]
        %v647 = vld [vmem:[#allocation2 + $0x3f0] sm:$0xff]
        %v648 = vld [vmem:[#allocation2 + $0x3f8] sm:$0xff]
        %v649 = vld [vmem:[#allocation2 + $0x400] sm:$0xff]
        %v650 = vld [vmem:[#allocation2 + $0x408] sm:$0xff]
        %v651 = vld [vmem:[#allocation2 + $0x410] sm:$0xff]
        %v652 = vld [vmem:[#allocation2 + $0x418] sm:$0xff]
        %v653 = vld [vmem:[#allocation2 + $0x420] sm:$0xff]
        %v654 = vld [vmem:[#allocation2 + $0x428] sm:$0xff]
        %v655 = vld [vmem:[#allocation2 + $0x430] sm:$0xff]
        %v656 = vld [vmem:[#allocation2 + $0x438] sm:$0xff]
        %v657 = vld [vmem:[#allocation2 + $0x440] sm:$0xff]
        %v658 = vld [vmem:[#allocation2 + $0x448] sm:$0xff]
        %v659 = vld [vmem:[#allocation2 + $0x450] sm:$0xff]
        %v660 = vld [vmem:[#allocation2 + $0x458] sm:$0xff]
        %v661 = vld [vmem:[#allocation2 + $0x460] sm:$0xff]
        %v662 = vld [vmem:[#allocation2 + $0x468] sm:$0xff]
        %v663 = vld [vmem:[#allocation2 + $0x470] sm:$0xff]
        %v664 = vld [vmem:[#allocation2 + $0x478] sm:$0xff]
        %v665 = vld [vmem:[%s2] sm:$0xff]
        %v666 = vld [vmem:[%s2 + $0x8] sm:$0xff]
        %668 = vset.pattern.permute.xlu0 0
        %669 = vperm.xlu0 %668, %v665
        %v670 = vpop.permute.xlu0 %669
        %673 = vset.pattern.permute.xlu0 0
        %674 = vperm.xlu0 %673, %v666
        %v675 = vpop.permute.xlu0 %674
        %vm677 = vcmask 588800
        %v679 = vsel %vm677, %v519, 0
        %v682 = vsel %vm677, %v520, 0
        %684 = vmatprep.subr.mxu0 %v522
        %685 = vmatpush1.msra.mxu0 %v521
        %686 = vmatprep.subr.mxu0 %v538
        %687 = vmatpush1.msra.mxu0 %v537
        %688 = vmatprep.subr.mxu0 %v554
        %689 = vmatpush1.msra.mxu0 %v553
        %690 = vmatprep.subr.mxu0 %v570
        %691 = vmatpush1.msra.mxu0 %v569
        %692 = vmatprep.subr.mxu0 %v586
        %693 = vmatpush1.msra.mxu0 %v585
        %694 = vmatprep.subr.mxu0 %v602
        %695 = vmatpush1.msra.mxu0 %v601
        %696 = vmatprep.subr.mxu0 %v618
        %697 = vmatpush1.msra.mxu0 %v617
        %698 = vmatprep.subr.mxu0 %v634
        %699 = vmatpush1.msra.mxu0 %v633
        %700 = vmatprep.subr.mxu0 %v650
        %701 = vmatpush1.msra.mxu0 %v649
        %702 = vmatprep.subr.mxu0 0.0
        %703 = vmatpush1.msra.mxu0 0.0
        %704 = vmatprep.subr.mxu0 0.0
        %705 = vmatpush1.msra.mxu0 0.0
        %706 = vmatprep.subr.mxu0 0.0
        %707 = vmatpush1.msra.mxu0 0.0
        %708 = vmatprep.subr.mxu0 0.0
        %709 = vmatpush1.msra.mxu0 0.0
        %710 = vmatprep.subr.mxu0 0.0
        %711 = vmatpush1.msra.mxu0 0.0
        %712 = vmatprep.subr.mxu0 0.0
        %713 = vmatpush1.msra.mxu0 0.0
        %714 = vmatprep.subr.mxu0 0.0
        %715 = vmatpush1.msra.mxu0 0.0
        %716 = vmatprep.subr.mxu0 0.0
        %717 = vmatpush1.msra.mxu0 0.0
        %718 = vmatprep.subr.mxu0 0.0
        %719 = vmatpush1.msra.mxu0 0.0
        %720 = vmatprep.subr.mxu0 0.0
        %721 = vmatpush1.msra.mxu0 0.0
        %722 = vmatprep.subr.mxu0 0.0
        %723 = vmatpush1.msra.mxu0 0.0
        %724 = vmatprep.subr.mxu0 0.0
        %725 = vmatpush1.msra.mxu0 0.0
        %726 = vmatprep.subr.mxu0 0.0
        %727 = vmatpush1.msra.mxu0 0.0
        %728 = vmatprep.subr.mxu0 0.0
        %729 = vmatpush1.msra.mxu0 0.0
        %730 = vmatprep.subr.mxu0 0.0
        %731 = vmatpush1.msra.mxu0 0.0
        %732 = vmatprep.subr.mxu0 0.0
        %733 = vmatpush1.msra.mxu0 0.0
        %734 = vmatprep.subr.mxu0 0.0
        %735 = vmatpush1.msra.mxu0 0.0
        %736 = vmatprep.subr.mxu0 0.0
        %737 = vmatpush1.msra.mxu0 0.0
        %738 = vmatprep.subr.mxu0 0.0
        %739 = vmatpush1.msra.mxu0 0.0
        %740 = vmatprep.subr.mxu0 0.0
        %741 = vmatpush1.msra.mxu0 0.0
        %742 = vmatprep.subr.mxu0 0.0
        %743 = vmatpush1.msra.mxu0 0.0
        %744 = vmatprep.subr.mxu0 0.0
        %745 = vmatpush1.msra.mxu0 0.0
        %746 = vmatprep.subr.mxu0 0.0
        %747 = vmatpush1.msra.mxu0 0.0
        %748 = vmatprep.mubr.f32.mxu0 0.0
        %749 = vmatmul.mubr.f32.gmra.mrb[0].mxu0 %v679
        %v750 = vpop.f32.mrb[0].mxu0
        %v751 = vadd.f32 %v670, %v750
        %v752 = vpop.f32.mrb[0].mxu0
        %v753 = vadd.f32 %v670, %v752
        %754 = vmatprep.mubr.f32.mxu0 0.0
        %755 = vmatmul.mubr.f32.gmra.mrb[0].mxu0 %v682
        %v756 = vpop.f32.mrb[0].mxu0
        %v757 = vadd.f32 %v675, %v756
        %v758 = vpop.f32.mrb[0].mxu0
        %v759 = vadd.f32 %v675, %v758
        %760 = vdwg.mxu0
        %761 = vmatprep.subr.mxu0 %v524
        %762 = vmatpush1.msra.mxu0 %v523
        %763 = vmatprep.subr.mxu0 %v540
        %764 = vmatpush1.msra.mxu0 %v539
        %765 = vmatprep.subr.mxu0 %v556
        %766 = vmatpush1.msra.mxu0 %v555
        %767 = vmatprep.subr.mxu0 %v572
        %768 = vmatpush1.msra.mxu0 %v571
        %769 = vmatprep.subr.mxu0 %v588
        %770 = vmatpush1.msra.mxu0 %v587
        %771 = vmatprep.subr.mxu0 %v604
        %772 = vmatpush1.msra.mxu0 %v603
        %773 = vmatprep.subr.mxu0 %v620
        %774 = vmatpush1.msra.mxu0 %v619
        %775 = vmatprep.subr.mxu0 %v636
        %776 = vmatpush1.msra.mxu0 %v635
        %777 = vmatprep.subr.mxu0 %v652
        %778 = vmatpush1.msra.mxu0 %v651
        %779 = vmatprep.subr.mxu0 0.0
        %780 = vmatpush1.msra.mxu0 0.0
        %781 = vmatprep.subr.mxu0 0.0
        %782 = vmatpush1.msra.mxu0 0.0
        %783 = vmatprep.subr.mxu0 0.0
        %784 = vmatpush1.msra.mxu0 0.0
        %785 = vmatprep.subr.mxu0 0.0
        %786 = vmatpush1.msra.mxu0 0.0
        %787 = vmatprep.subr.mxu0 0.0
        %788 = vmatpush1.msra.mxu0 0.0
        %789 = vmatprep.subr.mxu0 0.0
        %790 = vmatpush1.msra.mxu0 0.0
        %791 = vmatprep.subr.mxu0 0.0
        %792 = vmatpush1.msra.mxu0 0.0
        %793 = vmatprep.subr.mxu0 0.0
        %794 = vmatpush1.msra.mxu0 0.0
        %795 = vmatprep.subr.mxu0 0.0
        %796 = vmatpush1.msra.mxu0 0.0
        %797 = vmatprep.subr.mxu0 0.0
        %798 = vmatpush1.msra.mxu0 0.0
        %799 = vmatprep.subr.mxu0 0.0
        %800 = vmatpush1.msra.mxu0 0.0
        %801 = vmatprep.subr.mxu0 0.0
        %802 = vmatpush1.msra.mxu0 0.0
        %803 = vmatprep.subr.mxu0 0.0
        %804 = vmatpush1.msra.mxu0 0.0
        %805 = vmatprep.subr.mxu0 0.0
        %806 = vmatpush1.msra.mxu0 0.0
        %807 = vmatprep.subr.mxu0 0.0
        %808 = vmatpush1.msra.mxu0 0.0
        %809 = vmatprep.subr.mxu0 0.0
        %810 = vmatpush1.msra.mxu0 0.0
        %811 = vmatprep.subr.mxu0 0.0
        %812 = vmatpush1.msra.mxu0 0.0
        %813 = vmatprep.subr.mxu0 0.0
        %814 = vmatpush1.msra.mxu0 0.0
        %815 = vmatprep.subr.mxu0 0.0
        %816 = vmatpush1.msra.mxu0 0.0
        %817 = vmatprep.subr.mxu0 0.0
        %818 = vmatpush1.msra.mxu0 0.0
        %819 = vmatprep.subr.mxu0 0.0
        %820 = vmatpush1.msra.mxu0 0.0
        %821 = vmatprep.subr.mxu0 0.0
        %822 = vmatpush1.msra.mxu0 0.0
        %823 = vmatprep.subr.mxu0 0.0
        %824 = vmatpush1.msra.mxu0 0.0
        %825 = vmatprep.mubr.f32.mxu0 0.0
        %826 = vmatmul.mubr.f32.gmra.mrb[0].mxu0 %v679
        %v827 = vpop.f32.mrb[0].mxu0
        %v828 = vadd.f32 %v670, %v827
        %v829 = vpop.f32.mrb[0].mxu0
        %v830 = vadd.f32 %v670, %v829
        %831 = vmatprep.mubr.f32.mxu0 0.0
        %832 = vmatmul.mubr.f32.gmra.mrb[0].mxu0 %v682
        %v833 = vpop.f32.mrb[0].mxu0
        %v834 = vadd.f32 %v675, %v833
        %v835 = vpop.f32.mrb[0].mxu0
        %v836 = vadd.f32 %v675, %v835
        %837 = vdwg.mxu0
        %838 = vmatprep.subr.mxu0 %v526
        %839 = vmatpush1.msra.mxu0 %v525
        %840 = vmatprep.subr.mxu0 %v542
        %841 = vmatpush1.msra.mxu0 %v541
        %842 = vmatprep.subr.mxu0 %v558
        %843 = vmatpush1.msra.mxu0 %v557
        %844 = vmatprep.subr.mxu0 %v574
        %845 = vmatpush1.msra.mxu0 %v573
        %846 = vmatprep.subr.mxu0 %v590
        %847 = vmatpush1.msra.mxu0 %v589
        %848 = vmatprep.subr.mxu0 %v606
        %849 = vmatpush1.msra.mxu0 %v605
        %850 = vmatprep.subr.mxu0 %v622
        %851 = vmatpush1.msra.mxu0 %v621
        %852 = vmatprep.subr.mxu0 %v638
        %853 = vmatpush1.msra.mxu0 %v637
        %854 = vmatprep.subr.mxu0 %v654
        %855 = vmatpush1.msra.mxu0 %v653
        %856 = vmatprep.subr.mxu0 0.0
        %857 = vmatpush1.msra.mxu0 0.0
        %858 = vmatprep.subr.mxu0 0.0
        %859 = vmatpush1.msra.mxu0 0.0
        %860 = vmatprep.subr.mxu0 0.0
        %861 = vmatpush1.msra.mxu0 0.0
        %862 = vmatprep.subr.mxu0 0.0
        %863 = vmatpush1.msra.mxu0 0.0
        %864 = vmatprep.subr.mxu0 0.0
        %865 = vmatpush1.msra.mxu0 0.0
        %866 = vmatprep.subr.mxu0 0.0
        %867 = vmatpush1.msra.mxu0 0.0
        %868 = vmatprep.subr.mxu0 0.0
        %869 = vmatpush1.msra.mxu0 0.0
        %870 = vmatprep.subr.mxu0 0.0
        %871 = vmatpush1.msra.mxu0 0.0
        %872 = vmatprep.subr.mxu0 0.0
        %873 = vmatpush1.msra.mxu0 0.0
        %874 = vmatprep.subr.mxu0 0.0
        %875 = vmatpush1.msra.mxu0 0.0
        %876 = vmatprep.subr.mxu0 0.0
        %877 = vmatpush1.msra.mxu0 0.0
        %878 = vmatprep.subr.mxu0 0.0
        %879 = vmatpush1.msra.mxu0 0.0
        %880 = vmatprep.subr.mxu0 0.0
        %881 = vmatpush1.msra.mxu0 0.0
        %882 = vmatprep.subr.mxu0 0.0
        %883 = vmatpush1.msra.mxu0 0.0
        %884 = vmatprep.subr.mxu0 0.0
        %885 = vmatpush1.msra.mxu0 0.0
        %886 = vmatprep.subr.mxu0 0.0
        %887 = vmatpush1.msra.mxu0 0.0
        %888 = vmatprep.subr.mxu0 0.0
        %889 = vmatpush1.msra.mxu0 0.0
        %890 = vmatprep.subr.mxu0 0.0
        %891 = vmatpush1.msra.mxu0 0.0
        %892 = vmatprep.subr.mxu0 0.0
        %893 = vmatpush1.msra.mxu0 0.0
        %894 = vmatprep.subr.mxu0 0.0
        %895 = vmatpush1.msra.mxu0 0.0
        %896 = vmatprep.subr.mxu0 0.0
        %897 = vmatpush1.msra.mxu0 0.0
        %898 = vmatprep.subr.mxu0 0.0
        %899 = vmatpush1.msra.mxu0 0.0
        %900 = vmatprep.subr.mxu0 0.0
        %901 = vmatpush1.msra.mxu0 0.0
        %902 = vmatprep.mubr.f32.mxu0 0.0
        %903 = vmatmul.mubr.f32.gmra.mrb[0].mxu0 %v679
        %v904 = vpop.f32.mrb[0].mxu0
        %v905 = vadd.f32 %v670, %v904
        %v906 = vpop.f32.mrb[0].mxu0
        %v907 = vadd.f32 %v670, %v906
        %908 = vmatprep.mubr.f32.mxu0 0.0
        %909 = vmatmul.mubr.f32.gmra.mrb[0].mxu0 %v682
        %v910 = vpop.f32.mrb[0].mxu0
        %v911 = vadd.f32 %v675, %v910
        %v912 = vpop.f32.mrb[0].mxu0
        %v913 = vadd.f32 %v675, %v912
        %914 = vdwg.mxu0
        %915 = vmatprep.subr.mxu0 %v528
        %916 = vmatpush1.msra.mxu0 %v527
        %917 = vmatprep.subr.mxu0 %v544
        %918 = vmatpush1.msra.mxu0 %v543
        %919 = vmatprep.subr.mxu0 %v560
        %920 = vmatpush1.msra.mxu0 %v559
        %921 = vmatprep.subr.mxu0 %v576
        %922 = vmatpush1.msra.mxu0 %v575
        %923 = vmatprep.subr.mxu0 %v592
        %924 = vmatpush1.msra.mxu0 %v591
        %925 = vmatprep.subr.mxu0 %v608
        %926 = vmatpush1.msra.mxu0 %v607
        %927 = vmatprep.subr.mxu0 %v624
        %928 = vmatpush1.msra.mxu0 %v623
        %929 = vmatprep.subr.mxu0 %v640
        %930 = vmatpush1.msra.mxu0 %v639
        %931 = vmatprep.subr.mxu0 %v656
        %932 = vmatpush1.msra.mxu0 %v655
        %933 = vmatprep.subr.mxu0 0.0
        %934 = vmatpush1.msra.mxu0 0.0
        %935 = vmatprep.subr.mxu0 0.0
        %936 = vmatpush1.msra.mxu0 0.0
        %937 = vmatprep.subr.mxu0 0.0
        %938 = vmatpush1.msra.mxu0 0.0
        %939 = vmatprep.subr.mxu0 0.0
        %940 = vmatpush1.msra.mxu0 0.0
        %941 = vmatprep.subr.mxu0 0.0
        %942 = vmatpush1.msra.mxu0 0.0
        %943 = vmatprep.subr.mxu0 0.0
        %944 = vmatpush1.msra.mxu0 0.0
        %945 = vmatprep.subr.mxu0 0.0
        %946 = vmatpush1.msra.mxu0 0.0
        %947 = vmatprep.subr.mxu0 0.0
        %948 = vmatpush1.msra.mxu0 0.0
        %949 = vmatprep.subr.mxu0 0.0
        %950 = vmatpush1.msra.mxu0 0.0
        %951 = vmatprep.subr.mxu0 0.0
        %952 = vmatpush1.msra.mxu0 0.0
        %953 = vmatprep.subr.mxu0 0.0
        %954 = vmatpush1.msra.mxu0 0.0
        %955 = vmatprep.subr.mxu0 0.0
        %956 = vmatpush1.msra.mxu0 0.0
        %957 = vmatprep.subr.mxu0 0.0
        %958 = vmatpush1.msra.mxu0 0.0
        %959 = vmatprep.subr.mxu0 0.0
        %960 = vmatpush1.msra.mxu0 0.0
        %961 = vmatprep.subr.mxu0 0.0
        %962 = vmatpush1.msra.mxu0 0.0
        %963 = vmatprep.subr.mxu0 0.0
        %964 = vmatpush1.msra.mxu0 0.0
        %965 = vmatprep.subr.mxu0 0.0
        %966 = vmatpush1.msra.mxu0 0.0
        %967 = vmatprep.subr.mxu0 0.0
        %968 = vmatpush1.msra.mxu0 0.0
        %969 = vmatprep.subr.mxu0 0.0
        %970 = vmatpush1.msra.mxu0 0.0
        %971 = vmatprep.subr.mxu0 0.0
        %972 = vmatpush1.msra.mxu0 0.0
        %973 = vmatprep.subr.mxu0 0.0
        %974 = vmatpush1.msra.mxu0 0.0
        %975 = vmatprep.subr.mxu0 0.0
        %976 = vmatpush1.msra.mxu0 0.0
        %977 = vmatprep.subr.mxu0 0.0
        %978 = vmatpush1.msra.mxu0 0.0
        %979 = vmatprep.mubr.f32.mxu0 0.0
        %980 = vmatmul.mubr.f32.gmra.mrb[0].mxu0 %v679
        %v981 = vpop.f32.mrb[0].mxu0
        %v982 = vadd.f32 %v670, %v981
        %v983 = vpop.f32.mrb[0].mxu0
        %v984 = vadd.f32 %v670, %v983
        %985 = vmatprep.mubr.f32.mxu0 0.0
        %986 = vmatmul.mubr.f32.gmra.mrb[0].mxu0 %v682
        %v987 = vpop.f32.mrb[0].mxu0
        %v988 = vadd.f32 %v675, %v987
        %v989 = vpop.f32.mrb[0].mxu0
        %v990 = vadd.f32 %v675, %v989
        %991 = vdwg.mxu0
        %992 = vmatprep.subr.mxu0 %v530
        %993 = vmatpush1.msra.mxu0 %v529
        %994 = vmatprep.subr.mxu0 %v546
        %995 = vmatpush1.msra.mxu0 %v545
        %996 = vmatprep.subr.mxu0 %v562
        %997 = vmatpush1.msra.mxu0 %v561
        %998 = vmatprep.subr.mxu0 %v578
        %999 = vmatpush1.msra.mxu0 %v577
        %1000 = vmatprep.subr.mxu0 %v594
        %1001 = vmatpush1.msra.mxu0 %v593
        %1002 = vmatprep.subr.mxu0 %v610
        %1003 = vmatpush1.msra.mxu0 %v609
        %1004 = vmatprep.subr.mxu0 %v626
        %1005 = vmatpush1.msra.mxu0 %v625
        %1006 = vmatprep.subr.mxu0 %v642
        %1007 = vmatpush1.msra.mxu0 %v641
        %1008 = vmatprep.subr.mxu0 %v658
        %1009 = vmatpush1.msra.mxu0 %v657
        %1010 = vmatprep.subr.mxu0 0.0
        %1011 = vmatpush1.msra.mxu0 0.0
        %1012 = vmatprep.subr.mxu0 0.0
        %1013 = vmatpush1.msra.mxu0 0.0
        %1014 = vmatprep.subr.mxu0 0.0
        %1015 = vmatpush1.msra.mxu0 0.0
        %1016 = vmatprep.subr.mxu0 0.0
        %1017 = vmatpush1.msra.mxu0 0.0
        %1018 = vmatprep.subr.mxu0 0.0
        %1019 = vmatpush1.msra.mxu0 0.0
        %1020 = vmatprep.subr.mxu0 0.0
        %1021 = vmatpush1.msra.mxu0 0.0
        %1022 = vmatprep.subr.mxu0 0.0
        %1023 = vmatpush1.msra.mxu0 0.0
        %1024 = vmatprep.subr.mxu0 0.0
        %1025 = vmatpush1.msra.mxu0 0.0
        %1026 = vmatprep.subr.mxu0 0.0
        %1027 = vmatpush1.msra.mxu0 0.0
        %1028 = vmatprep.subr.mxu0 0.0
        %1029 = vmatpush1.msra.mxu0 0.0
        %1030 = vmatprep.subr.mxu0 0.0
        %1031 = vmatpush1.msra.mxu0 0.0
        %1032 = vmatprep.subr.mxu0 0.0
        %1033 = vmatpush1.msra.mxu0 0.0
        %1034 = vmatprep.subr.mxu0 0.0
        %1035 = vmatpush1.msra.mxu0 0.0
        %1036 = vmatprep.subr.mxu0 0.0
        %1037 = vmatpush1.msra.mxu0 0.0
        %1038 = vmatprep.subr.mxu0 0.0
        %1039 = vmatpush1.msra.mxu0 0.0
        %1040 = vmatprep.subr.mxu0 0.0
        %1041 = vmatpush1.msra.mxu0 0.0
        %1042 = vmatprep.subr.mxu0 0.0
        %1043 = vmatpush1.msra.mxu0 0.0
        %1044 = vmatprep.subr.mxu0 0.0
        %1045 = vmatpush1.msra.mxu0 0.0
        %1046 = vmatprep.subr.mxu0 0.0
        %1047 = vmatpush1.msra.mxu0 0.0
        %1048 = vmatprep.subr.mxu0 0.0
        %1049 = vmatpush1.msra.mxu0 0.0
        %1050 = vmatprep.subr.mxu0 0.0
        %1051 = vmatpush1.msra.mxu0 0.0
        %1052 = vmatprep.subr.mxu0 0.0
        %1053 = vmatpush1.msra.mxu0 0.0
        %1054 = vmatprep.subr.mxu0 0.0
        %1055 = vmatpush1.msra.mxu0 0.0
        %1056 = vmatprep.mubr.f32.mxu0 0.0
        %1057 = vmatmul.mubr.f32.gmra.mrb[0].mxu0 %v679
        %v1058 = vpop.f32.mrb[0].mxu0
        %v1059 = vadd.f32 %v670, %v1058
        %v1060 = vpop.f32.mrb[0].mxu0
        %v1061 = vadd.f32 %v670, %v1060
        %1062 = vmatprep.mubr.f32.mxu0 0.0
        %1063 = vmatmul.mubr.f32.gmra.mrb[0].mxu0 %v682
        %v1064 = vpop.f32.mrb[0].mxu0
        %v1065 = vadd.f32 %v675, %v1064
        %v1066 = vpop.f32.mrb[0].mxu0
        %v1067 = vadd.f32 %v675, %v1066
        %1068 = vdwg.mxu0
        %1069 = vmatprep.subr.mxu0 %v532
        %1070 = vmatpush1.msra.mxu0 %v531
        %1071 = vmatprep.subr.mxu0 %v548
        %1072 = vmatpush1.msra.mxu0 %v547
        %1073 = vmatprep.subr.mxu0 %v564
        %1074 = vmatpush1.msra.mxu0 %v563
        %1075 = vmatprep.subr.mxu0 %v580
        %1076 = vmatpush1.msra.mxu0 %v579
        %1077 = vmatprep.subr.mxu0 %v596
        %1078 = vmatpush1.msra.mxu0 %v595
        %1079 = vmatprep.subr.mxu0 %v612
        %1080 = vmatpush1.msra.mxu0 %v611
        %1081 = vmatprep.subr.mxu0 %v628
        %1082 = vmatpush1.msra.mxu0 %v627
        %1083 = vmatprep.subr.mxu0 %v644
        %1084 = vmatpush1.msra.mxu0 %v643
        %1085 = vmatprep.subr.mxu0 %v660
        %1086 = vmatpush1.msra.mxu0 %v659
        %1087 = vmatprep.subr.mxu0 0.0
        %1088 = vmatpush1.msra.mxu0 0.0
        %1089 = vmatprep.subr.mxu0 0.0
        %1090 = vmatpush1.msra.mxu0 0.0
        %1091 = vmatprep.subr.mxu0 0.0
        %1092 = vmatpush1.msra.mxu0 0.0
        %1093 = vmatprep.subr.mxu0 0.0
        %1094 = vmatpush1.msra.mxu0 0.0
        %1095 = vmatprep.subr.mxu0 0.0
        %1096 = vmatpush1.msra.mxu0 0.0
        %1097 = vmatprep.subr.mxu0 0.0
        %1098 = vmatpush1.msra.mxu0 0.0
        %1099 = vmatprep.subr.mxu0 0.0
        %1100 = vmatpush1.msra.mxu0 0.0
        %1101 = vmatprep.subr.mxu0 0.0
        %1102 = vmatpush1.msra.mxu0 0.0
        %1103 = vmatprep.subr.mxu0 0.0
        %1104 = vmatpush1.msra.mxu0 0.0
        %1105 = vmatprep.subr.mxu0 0.0
        %1106 = vmatpush1.msra.mxu0 0.0
        %1107 = vmatprep.subr.mxu0 0.0
        %1108 = vmatpush1.msra.mxu0 0.0
        %1109 = vmatprep.subr.mxu0 0.0
        %1110 = vmatpush1.msra.mxu0 0.0
        %1111 = vmatprep.subr.mxu0 0.0
        %1112 = vmatpush1.msra.mxu0 0.0
        %1113 = vmatprep.subr.mxu0 0.0
        %1114 = vmatpush1.msra.mxu0 0.0
        %1115 = vmatprep.subr.mxu0 0.0
        %1116 = vmatpush1.msra.mxu0 0.0
        %1117 = vmatprep.subr.mxu0 0.0
        %1118 = vmatpush1.msra.mxu0 0.0
        %1119 = vmatprep.subr.mxu0 0.0
        %1120 = vmatpush1.msra.mxu0 0.0
        %1121 = vmatprep.subr.mxu0 0.0
        %1122 = vmatpush1.msra.mxu0 0.0
        %1123 = vmatprep.subr.mxu0 0.0
        %1124 = vmatpush1.msra.mxu0 0.0
        %1125 = vmatprep.subr.mxu0 0.0
        %1126 = vmatpush1.msra.mxu0 0.0
        %1127 = vmatprep.subr.mxu0 0.0
        %1128 = vmatpush1.msra.mxu0 0.0
        %1129 = vmatprep.subr.mxu0 0.0
        %1130 = vmatpush1.msra.mxu0 0.0
        %1131 = vmatprep.subr.mxu0 0.0
        %1132 = vmatpush1.msra.mxu0 0.0
        %1133 = vmatprep.mubr.f32.mxu0 0.0
        %1134 = vmatmul.mubr.f32.gmra.mrb[0].mxu0 %v679
        %v1135 = vpop.f32.mrb[0].mxu0
        %v1136 = vadd.f32 %v670, %v1135
        %v1137 = vpop.f32.mrb[0].mxu0
        %v1138 = vadd.f32 %v670, %v1137
        %1139 = vmatprep.mubr.f32.mxu0 0.0
        %1140 = vmatmul.mubr.f32.gmra.mrb[0].mxu0 %v682
        %v1141 = vpop.f32.mrb[0].mxu0
        %v1142 = vadd.f32 %v675, %v1141
        %v1143 = vpop.f32.mrb[0].mxu0
        %v1144 = vadd.f32 %v675, %v1143
        %1145 = vdwg.mxu0
        %1146 = vmatprep.subr.mxu0 %v534
        %1147 = vmatpush1.msra.mxu0 %v533
        %1148 = vmatprep.subr.mxu0 %v550
        %1149 = vmatpush1.msra.mxu0 %v549
        %1150 = vmatprep.subr.mxu0 %v566
        %1151 = vmatpush1.msra.mxu0 %v565
        %1152 = vmatprep.subr.mxu0 %v582
        %1153 = vmatpush1.msra.mxu0 %v581
        %1154 = vmatprep.subr.mxu0 %v598
        %1155 = vmatpush1.msra.mxu0 %v597
        %1156 = vmatprep.subr.mxu0 %v614
        %1157 = vmatpush1.msra.mxu0 %v613
        %1158 = vmatprep.subr.mxu0 %v630
        %1159 = vmatpush1.msra.mxu0 %v629
        %1160 = vmatprep.subr.mxu0 %v646
        %1161 = vmatpush1.msra.mxu0 %v645
        %1162 = vmatprep.subr.mxu0 %v662
        %1163 = vmatpush1.msra.mxu0 %v661
        %1164 = vmatprep.subr.mxu0 0.0
        %1165 = vmatpush1.msra.mxu0 0.0
        %1166 = vmatprep.subr.mxu0 0.0
        %1167 = vmatpush1.msra.mxu0 0.0
        %1168 = vmatprep.subr.mxu0 0.0
        %1169 = vmatpush1.msra.mxu0 0.0
        %1170 = vmatprep.subr.mxu0 0.0
        %1171 = vmatpush1.msra.mxu0 0.0
        %1172 = vmatprep.subr.mxu0 0.0
        %1173 = vmatpush1.msra.mxu0 0.0
        %1174 = vmatprep.subr.mxu0 0.0
        %1175 = vmatpush1.msra.mxu0 0.0
        %1176 = vmatprep.subr.mxu0 0.0
        %1177 = vmatpush1.msra.mxu0 0.0
        %1178 = vmatprep.subr.mxu0 0.0
        %1179 = vmatpush1.msra.mxu0 0.0
        %1180 = vmatprep.subr.mxu0 0.0
        %1181 = vmatpush1.msra.mxu0 0.0
        %1182 = vmatprep.subr.mxu0 0.0
        %1183 = vmatpush1.msra.mxu0 0.0
        %1184 = vmatprep.subr.mxu0 0.0
        %1185 = vmatpush1.msra.mxu0 0.0
        %1186 = vmatprep.subr.mxu0 0.0
        %1187 = vmatpush1.msra.mxu0 0.0
        %1188 = vmatprep.subr.mxu0 0.0
        %1189 = vmatpush1.msra.mxu0 0.0
        %1190 = vmatprep.subr.mxu0 0.0
        %1191 = vmatpush1.msra.mxu0 0.0
        %1192 = vmatprep.subr.mxu0 0.0
        %1193 = vmatpush1.msra.mxu0 0.0
        %1194 = vmatprep.subr.mxu0 0.0
        %1195 = vmatpush1.msra.mxu0 0.0
        %1196 = vmatprep.subr.mxu0 0.0
        %1197 = vmatpush1.msra.mxu0 0.0
        %1198 = vmatprep.subr.mxu0 0.0
        %1199 = vmatpush1.msra.mxu0 0.0
        %1200 = vmatprep.subr.mxu0 0.0
        %1201 = vmatpush1.msra.mxu0 0.0
        %1202 = vmatprep.subr.mxu0 0.0
        %1203 = vmatpush1.msra.mxu0 0.0
        %1204 = vmatprep.subr.mxu0 0.0
        %1205 = vmatpush1.msra.mxu0 0.0
        %1206 = vmatprep.subr.mxu0 0.0
        %1207 = vmatpush1.msra.mxu0 0.0
        %1208 = vmatprep.subr.mxu0 0.0
        %1209 = vmatpush1.msra.mxu0 0.0
        %1210 = vmatprep.mubr.f32.mxu0 0.0
        %1211 = vmatmul.mubr.f32.gmra.mrb[0].mxu0 %v679
        %v1212 = vpop.f32.mrb[0].mxu0
        %v1213 = vadd.f32 %v670, %v1212
        %v1214 = vpop.f32.mrb[0].mxu0
        %v1215 = vadd.f32 %v670, %v1214
        %1216 = vmatprep.mubr.f32.mxu0 0.0
        %1217 = vmatmul.mubr.f32.gmra.mrb[0].mxu0 %v682
        %v1218 = vpop.f32.mrb[0].mxu0
        %v1219 = vadd.f32 %v675, %v1218
        %v1220 = vpop.f32.mrb[0].mxu0
        %v1221 = vadd.f32 %v675, %v1220
        %1222 = vdwg.mxu0
        %1223 = vmatprep.subr.mxu0 %v536
        %1224 = vmatpush1.msra.mxu0 %v535
        %1225 = vmatprep.subr.mxu0 %v552
        %1226 = vmatpush1.msra.mxu0 %v551
        %1227 = vmatprep.subr.mxu0 %v568
        %1228 = vmatpush1.msra.mxu0 %v567
        %1229 = vmatprep.subr.mxu0 %v584
        %1230 = vmatpush1.msra.mxu0 %v583
        %1231 = vmatprep.subr.mxu0 %v600
        %1232 = vmatpush1.msra.mxu0 %v599
        %1233 = vmatprep.subr.mxu0 %v616
        %1234 = vmatpush1.msra.mxu0 %v615
        %1235 = vmatprep.subr.mxu0 %v632
        %1236 = vmatpush1.msra.mxu0 %v631
        %1237 = vmatprep.subr.mxu0 %v648
        %1238 = vmatpush1.msra.mxu0 %v647
        %1239 = vmatprep.subr.mxu0 %v664
        %1240 = vmatpush1.msra.mxu0 %v663
        %1241 = vmatprep.subr.mxu0 0.0
        %1242 = vmatpush1.msra.mxu0 0.0
        %1243 = vmatprep.subr.mxu0 0.0
        %1244 = vmatpush1.msra.mxu0 0.0
        %1245 = vmatprep.subr.mxu0 0.0
        %1246 = vmatpush1.msra.mxu0 0.0
        %1247 = vmatprep.subr.mxu0 0.0
        %1248 = vmatpush1.msra.mxu0 0.0
        %1249 = vmatprep.subr.mxu0 0.0
        %1250 = vmatpush1.msra.mxu0 0.0
        %1251 = vmatprep.subr.mxu0 0.0
        %1252 = vmatpush1.msra.mxu0 0.0
        %1253 = vmatprep.subr.mxu0 0.0
        %1254 = vmatpush1.msra.mxu0 0.0
        %1255 = vmatprep.subr.mxu0 0.0
        %1256 = vmatpush1.msra.mxu0 0.0
        %1257 = vmatprep.subr.mxu0 0.0
        %1258 = vmatpush1.msra.mxu0 0.0
        %1259 = vmatprep.subr.mxu0 0.0
        %1260 = vmatpush1.msra.mxu0 0.0
        %1261 = vmatprep.subr.mxu0 0.0
        %1262 = vmatpush1.msra.mxu0 0.0
        %1263 = vmatprep.subr.mxu0 0.0
        %1264 = vmatpush1.msra.mxu0 0.0
        %1265 = vmatprep.subr.mxu0 0.0
        %1266 = vmatpush1.msra.mxu0 0.0
        %1267 = vmatprep.subr.mxu0 0.0
        %1268 = vmatpush1.msra.mxu0 0.0
        %1269 = vmatprep.subr.mxu0 0.0
        %1270 = vmatpush1.msra.mxu0 0.0
        %1271 = vmatprep.subr.mxu0 0.0
        %1272 = vmatpush1.msra.mxu0 0.0
        %1273 = vmatprep.subr.mxu0 0.0
        %1274 = vmatpush1.msra.mxu0 0.0
        %1275 = vmatprep.subr.mxu0 0.0
        %1276 = vmatpush1.msra.mxu0 0.0
        %1277 = vmatprep.subr.mxu0 0.0
        %1278 = vmatpush1.msra.mxu0 0.0
        %1279 = vmatprep.subr.mxu0 0.0
        %1280 = vmatpush1.msra.mxu0 0.0
        %1281 = vmatprep.subr.mxu0 0.0
        %1282 = vmatpush1.msra.mxu0 0.0
        %1283 = vmatprep.subr.mxu0 0.0
        %1284 = vmatpush1.msra.mxu0 0.0
        %1285 = vmatprep.subr.mxu0 0.0
        %1286 = vmatpush1.msra.mxu0 0.0
        %1287 = vmatprep.mubr.f32.mxu0 0.0
        %1288 = vmatmul.mubr.f32.gmra.mrb[0].mxu0 %v679
        %v1289 = vpop.f32.mrb[0].mxu0
        %v1290 = vadd.f32 %v670, %v1289
        %v1291 = vpop.f32.mrb[0].mxu0
        %v1292 = vadd.f32 %v670, %v1291
        %1293 = vmatprep.mubr.f32.mxu0 0.0
        %1294 = vmatmul.mubr.f32.gmra.mrb[0].mxu0 %v682
        %v1295 = vpop.f32.mrb[0].mxu0
        %v1296 = vadd.f32 %v675, %v1295
        %v1297 = vpop.f32.mrb[0].mxu0
        %v1298 = vadd.f32 %v675, %v1297
        %1299 = vdwg.mxu0
        %1300 = vst [vmem:[%s186] sm:$0xff] %v751
        %1301 = vst [vmem:[%s186 + $0x8] sm:$0xff] %v753
        %1302 = vst [vmem:[%s186 + $0x10] sm:$0xff] %v828
        %1303 = vst [vmem:[%s186 + $0x18] sm:$0xff] %v830
        %1304 = vst [vmem:[%s186 + $0x20] sm:$0xff] %v905
        %1305 = vst [vmem:[%s186 + $0x28] sm:$0xff] %v907
        %1306 = vst [vmem:[%s186 + $0x30] sm:$0xff] %v982
        %1307 = vst [vmem:[%s186 + $0x38] sm:$0xff] %v984
        %1308 = vst [vmem:[%s186 + $0x40] sm:$0xff] %v1059
        %1309 = vst [vmem:[%s186 + $0x48] sm:$0xff] %v1061
        %1310 = vst [vmem:[%s186 + $0x50] sm:$0xff] %v1136
        %1311 = vst [vmem:[%s186 + $0x58] sm:$0xff] %v1138
        %1312 = vst [vmem:[%s186 + $0x60] sm:$0xff] %v1213
        %1313 = vst [vmem:[%s186 + $0x68] sm:$0xff] %v1215
        %1314 = vst [vmem:[%s186 + $0x70] sm:$0xff] %v1290
        %1315 = vst [vmem:[%s186 + $0x78] sm:$0xff] %v1292
        %1316 = vst [vmem:[%s186 + $0x80] sm:$0xff] %v757
        %1317 = vst [vmem:[%s186 + $0x88] sm:$0xff] %v759
        %1318 = vst [vmem:[%s186 + $0x90] sm:$0xff] %v834
        %1319 = vst [vmem:[%s186 + $0x98] sm:$0xff] %v836
        %1320 = vst [vmem:[%s186 + $0xa0] sm:$0xff] %v911
        %1321 = vst [vmem:[%s186 + $0xa8] sm:$0xff] %v913
        %1322 = vst [vmem:[%s186 + $0xb0] sm:$0xff] %v988
        %1323 = vst [vmem:[%s186 + $0xb8] sm:$0xff] %v990
        %1324 = vst [vmem:[%s186 + $0xc0] sm:$0xff] %v1065
        %1325 = vst [vmem:[%s186 + $0xc8] sm:$0xff] %v1067
        %1326 = vst [vmem:[%s186 + $0xd0] sm:$0xff] %v1142
        %1327 = vst [vmem:[%s186 + $0xd8] sm:$0xff] %v1144
        %1328 = vst [vmem:[%s186 + $0xe0] sm:$0xff] %v1219
        %1329 = vst [vmem:[%s186 + $0xe8] sm:$0xff] %v1221
        %1330 = vst [vmem:[%s186 + $0xf0] sm:$0xff] %v1296
        %1331 = vst [vmem:[%s186 + $0xf8] sm:$0xff] %v1298
        %s1332 = sand.u32 %s96, 1
        %s1333 = scalar_lea.sflag [#allocation5], %s1332
        %s1334 = sand.u32 %s96, 1
        %s1335 = smul.addr %s1334, 256
        %s1336 = scalar_lea.vmem [#allocation6], %s1335
        // Predicated region
        $region37: #{tpu_custom_call.1} parent=31 // pred_check
          %p1337 = pneg %p106
        $region38: #{tpu_custom_call.1} parent=31 // pred_check_branch
          %1339 = sbr.rel (%p1337) target = $region40
        $region39: #{tpu_custom_call.1} parent=31 // pred_region
          %s1341 = ssub.s32 4096, 4096
          %1342 = vsyncadd %s1333, %s1341
          %s1343 = smul.addr %s20, 32
          %s1344 = smul.addr %s1343, 128
          %s1345 = scalar_lea.hbm %s3, %s1344
          %s1346 = sshll.u32 %s1336, 4
          %s1347 = int_to_ptr.vmem [resolvable:$true] %s1346
          %1352 = dma.vmem_to_hbm [thread:$0]  %s1347, 4096, %s1345, %s1333, 2048, 2048, 128
        $region40: #{tpu_custom_call.1} parent=31 // pred_fallthru
          _
      $region32: #{tpu_custom_call.1} parent=5 // pred_fallthru
        _
      %p1353 = scmp.le.s32.totalorder 2, %s15
      // Predicated region
      $region41: #{tpu_custom_call.1} parent=5 // pred_check
        %p1354 = pneg %p1353
      $region42: #{tpu_custom_call.1} parent=5 // pred_check_branch
        %1356 = sbr.rel (%p1354) target = $region44
      $region43: #{tpu_custom_call.1} parent=5 // pred_region
        %s1357 = ssub.s32 %s15, 2
        // Predicated region
        $region45: #{tpu_custom_call.1} parent=43 // pred_check
          %p1358 = pneg %p112
        $region46: #{tpu_custom_call.1} parent=43 // pred_check_branch
          %1360 = sbr.rel (%p1358) target = $region48
        $region47: #{tpu_custom_call.1} parent=43 // pred_region
          %s1361 = sand.u32 %s97, 1
          %s1362 = scalar_lea.sflag [#allocation5], %s1361
          %s1363 = sand.u32 %s97, 1
          %s1364 = smul.addr %s1363, 256
          %s1365 = scalar_lea.vmem [#allocation6], %s1364
          %1366 = dma.done %s1362, 4096
        $region48: #{tpu_custom_call.1} parent=43 // pred_fallthru
          _
      $region44: #{tpu_custom_call.1} parent=5 // pred_fallthru
        _
    $region6: #{tpu_custom_call.1} parent=1 // loop_footer
      %s19 = sadd.s32 1, %s15
    $region7: #{tpu_custom_call.1} parent=1 // loop_footer_branch
      %14 = sbr.rel target = $region3
    $region8: #{tpu_custom_call.1} parent=1 // loop_exit
      _
    %1367 = vsyncpa [#allocation4], 1
    %s1368 = scalar_lea.sflag [#allocation4], 1
    %1369 = vsyncpa %s1368, 1
    %1370 = vsyncpa [#allocation5], 1
    %s1371 = scalar_lea.sflag [#allocation5], 1
    %1372 = vsyncpa %s1371, 1

</llo_original>
